<compile_context>
chip_gen: v6e
topology: v6e:2x2x1
jax: 0.10.0
libtpu: 0.0.40
codegen_flags: <defaults>
</compile_context>

<pallas_src>
import functools

import jax
import jax.numpy as jnp
from jax import lax
from jax.experimental import pallas as pl
from jax.experimental.pallas import tpu as pltpu


def _conv_kernel(x_ref, w_ref, b_ref, o_ref, *, KH, KW, SH, SW, TH):
    # x_ref: (1, SH*SW, H2, W2, Cin)  phase-split padded input (one batch elem)
    # w_ref: (KH*KW, Cin, TC)         weight tile for the current Cout tile
    # b_ref: (1, TC)                  bias tile
    # o_ref: (1, TH, Wo, TC)          output tile
    Wo, TC = o_ref.shape[2], o_ref.shape[3]
    Cin = x_ref.shape[-1]

    h0 = pl.multiple_of(pl.program_id(1) * TH, TH)  # first output row of this tile

    acc = jnp.zeros((TH * Wo, TC), jnp.float32)
    # One small matmul per kernel tap (static Python loop -> unrolled).
    for kh in range(KH):
        for kw in range(KW):
            phase = (kh % SH) * SW + (kw % SW)
            # Contiguous slice thanks to the wrapper-side phase split.
            patch = x_ref[0, phase,
                          pl.ds(h0 + kh // SH, TH),
                          pl.ds(kw // SW, Wo), :]          # (TH, Wo, Cin)
            acc += jnp.dot(
                patch.reshape(TH * Wo, Cin),
                w_ref[kh * KW + kw],
                preferred_element_type=jnp.float32,
            )

    acc += b_ref[0].astype(jnp.float32)[None, :]
    o_ref[...] = acc.reshape(1, TH, Wo, TC).astype(o_ref.dtype)


def conv2d_pallas(x_nchw, w_oihw, bias=None, stride=(1, 1), padding=(1, 1)):
    """aten.convolution.default for groups=1, dilation=1, transposed=False."""
    N, Cin, H, W = x_nchw.shape
    Cout, Cin_w, KH, KW = w_oihw.shape
    assert Cin == Cin_w, "groups != 1 not supported"  # TODO(synk): grouped conv
    SH, SW = stride
    PH, PW = padding

    Ho = (H + 2 * PH - KH) // SH + 1
    Wo = (W + 2 * PW - KW) // SW + 1

    # ---- tiling choices --------------------------------------------------
    TC = 128                                    # lane-dense Cout tile
    Cout_pad = pl.cdiv(Cout, TC) * TC
    TH = max(1, min(Ho, max(1, 128 // Wo)))     # ~128 output rows per MXU LHS
    Ho_pad = pl.cdiv(Ho, TH) * TH
    HT, CT = Ho_pad // TH, Cout_pad // TC

    # ---- glue: layout conversion, padding, stride phase-split (plain XLA) -
    x_nhwc = jnp.transpose(x_nchw, (0, 2, 3, 1))                  # (N, H, W, Cin)
    need_h = (Ho_pad - 1) * SH + KH
    need_w = (Wo - 1) * SW + KW
    Hp = pl.cdiv(max(H + 2 * PH, need_h), SH) * SH
    Wp = pl.cdiv(max(W + 2 * PW, need_w), SW) * SW
    x_pad = jnp.pad(
        x_nhwc, ((0, 0), (PH, Hp - H - PH), (PW, Wp - W - PW), (0, 0)))
    H2, W2 = Hp // SH, Wp // SW
    # Split stride phases so in-kernel tap slices are contiguous.
    x_s = (x_pad.reshape(N, H2, SH, W2, SW, Cin)
                .transpose(0, 2, 4, 1, 3, 5)
                .reshape(N, SH * SW, H2, W2, Cin))

    # Weights: OIHW -> (KH*KW, Cin, Cout_pad), zero-padded over Cout.
    w = jnp.transpose(w_oihw, (2, 3, 1, 0)).reshape(KH * KW, Cin, Cout)
    w = jnp.pad(w, ((0, 0), (0, 0), (0, Cout_pad - Cout)))
    if bias is None:
        b = jnp.zeros((1, Cout_pad), x_nchw.dtype)
    else:
        b = jnp.pad(bias.reshape(1, Cout), ((0, 0), (0, Cout_pad - Cout)))

    kernel = functools.partial(_conv_kernel, KH=KH, KW=KW, SH=SH, SW=SW, TH=TH)

    # VMEM budget: double-buffered blocks + accumulator, clamped for all chips.
    itemsize = jnp.dtype(x_nchw.dtype).itemsize
    blk_bytes = (SH * SW * H2 * W2 * Cin
                 + KH * KW * Cin * TC
                 + TC
                 + TH * Wo * TC) * itemsize + TH * Wo * TC * 4
    vmem_limit = int(min(max(2 * blk_bytes + (4 << 20), 16 << 20), 48 << 20))

    out_nhwc = pl.pallas_call(
        kernel,
        out_shape=jax.ShapeDtypeStruct((N, Ho_pad, Wo, Cout_pad), x_nchw.dtype),
        grid_spec=pltpu.PrefetchScalarGridSpec(
            num_scalar_prefetch=0,
            grid=(N, HT, CT),
            in_specs=[
                pl.BlockSpec((1, SH * SW, H2, W2, Cin),
                             lambda n, h, c: (n, 0, 0, 0, 0)),
                pl.BlockSpec((KH * KW, Cin, TC), lambda n, h, c: (0, 0, c)),
                pl.BlockSpec((1, TC), lambda n, h, c: (0, c)),
            ],
            out_specs=pl.BlockSpec((1, TH, Wo, TC),
                                   lambda n, h, c: (n, h, 0, c)),
        ),
        compiler_params=pltpu.CompilerParams(
            dimension_semantics=("parallel", "parallel", "parallel"),
            vmem_limit_bytes=vmem_limit,
        ),
    )(x_s, w, b)

    # Drop the Ho / Cout padding and return in PyTorch NCHW convention.
    out_nhwc = out_nhwc[:, :Ho, :, :Cout]
    return jnp.transpose(out_nhwc, (0, 3, 1, 2))


def _reference(x, w, bias, stride, padding):
    ref = lax.conv_general_dilated(
        x, w, window_strides=stride,
        padding=[(padding[0], padding[0]), (padding[1], padding[1])],
        dimension_numbers=("NCHW", "OIHW", "NCHW"))
    if bias is not None:
        ref = ref + bias.reshape(1, -1, 1, 1)
    return ref


if __name__ == "__main__":
    key = jax.random.PRNGKey(0)
    k1, k2, k3, k4, k5 = jax.random.split(key, 5)

    # Case 1: stride-1 3x3 conv (RegNet body style), N=2, Cin=4, 16x16 -> Cout=8.
    N, Cin, H, W = 2, 4, 16, 16
    Cout, KH, KW = 8, 3, 3
    stride, padding = (1, 1), (1, 1)
    x = jax.random.normal(k1, (N, Cin, H, W), dtype=jnp.float32)
    w = jax.random.normal(k2, (Cout, Cin, KH, KW), dtype=jnp.float32) * 0.1
    bvec = jax.random.normal(k3, (Cout,), dtype=jnp.float32) * 0.1

    out = jax.block_until_ready(conv2d_pallas(x, w, bvec, stride, padding))
    ref = _reference(x, w, bvec, stride, padding)
    assert out.shape == ref.shape
    assert jnp.allclose(out, ref, atol=1e-4, rtol=1e-4), "mismatch (stride-1 case)"

    # Case 2: stride-2 3x3 conv (RegNet stem style), no bias, odd spatial size.
    N2, Cin2, H2, W2 = 1, 3, 15, 15
    Cout2 = 16
    stride2, padding2 = (2, 2), (1, 1)
    x2 = jax.random.normal(k4, (N2, Cin2, H2, W2), dtype=jnp.float32)
    w2 = jax.random.normal(k5, (Cout2, Cin2, KH, KW), dtype=jnp.float32) * 0.1

    out2 = jax.block_until_ready(conv2d_pallas(x2, w2, None, stride2, padding2))
    ref2 = _reference(x2, w2, None, stride2, padding2)
    assert out2.shape == ref2.shape
    assert jnp.allclose(out2, ref2, atol=1e-4, rtol=1e-4), "mismatch (stride-2 case)"

    print("KERNEL_OK")
</pallas_src>

<mosaic_0001>
module attributes {stable_mosaic.version = 11 : i64} {
  func.func @_conv_kernel(%arg0: i32, %arg1: i32, %arg2: i32, %arg3: memref<1x1x18x18x4xf32, #tpu.memory_space<vmem>>, %arg4: memref<9x4x128xf32, #tpu.memory_space<vmem>>, %arg5: memref<1x128xf32, #tpu.memory_space<vmem>>, %arg6: memref<1x8x16x128xf32, #tpu.memory_space<vmem>>) attributes {dimension_semantics = [#tpu.dimension_semantics<parallel>, #tpu.dimension_semantics<parallel>, #tpu.dimension_semantics<parallel>], iteration_bounds = array<i64: 2, 2, 1>, scalar_prefetch = 0 : i64, scratch_operands = 0 : i64, tpu.core_type = #tpu.core_type<tc>, window_params = [{transform_indices = @transform_0, window_bounds = array<i64: 1, 1, 18, 18, 4>}, {transform_indices = @transform_1, window_bounds = array<i64: 9, 4, 128>}, {transform_indices = @transform_2, window_bounds = array<i64: 1, 128>}, {transform_indices = @transform_3, window_bounds = array<i64: 1, 8, 16, 128>}]} {
    %c8_i32 = arith.constant 8 : i32
    %0 = arith.muli %arg1, %c8_i32 : i32
    %1 = tpu.assume_multiple %0, 8 : i32
    %cst = arith.constant 0.000000e+00 : f32
    %2 = vector.broadcast %cst : f32 to vector<128x128xf32>
    %c0_i32 = arith.constant 0 : i32
    %3 = arith.addi %1, %c0_i32 : i32
    %c0 = arith.constant 0 : index
    %c0_0 = arith.constant 0 : index
    %4 = arith.index_cast %3 : i32 to index
    %c0_1 = arith.constant 0 : index
    %c0_2 = arith.constant 0 : index
    %5 = vector.load %arg3[%c0, %c0_0, %4, %c0_1, %c0_2] : memref<1x1x18x18x4xf32, #tpu.memory_space<vmem>>, vector<1x1x8x16x4xf32>
    %6 = vector.shape_cast %5 : vector<1x1x8x16x4xf32> to vector<8x16x4xf32>
    %7 = vector.shape_cast %6 : vector<8x16x4xf32> to vector<128x4xf32>
    %c0_3 = arith.constant 0 : index
    %c0_4 = arith.constant 0 : index
    %c0_5 = arith.constant 0 : index
    %8 = vector.load %arg4[%c0_3, %c0_4, %c0_5] : memref<9x4x128xf32, #tpu.memory_space<vmem>>, vector<1x4x128xf32>
    %9 = vector.shape_cast %8 : vector<1x4x128xf32> to vector<4x128xf32>
    %cst_6 = arith.constant dense<0.000000e+00> : vector<128x128xf32>
    %10 = tpu.matmul %7, %9, %cst_6 {dimension_numbers = #tpu.dot_dimension_numbers<[1], [0], [0], [1], [0, 0, 1, 1], [], []>} : vector<128x4xf32>, vector<4x128xf32>, vector<128x128xf32> -> vector<128x128xf32>
    %11 = arith.addf %2, %10 : vector<128x128xf32>
    %c0_i32_7 = arith.constant 0 : i32
    %12 = arith.addi %1, %c0_i32_7 : i32
    %c0_8 = arith.constant 0 : index
    %c0_9 = arith.constant 0 : index
    %13 = arith.index_cast %12 : i32 to index
    %c1 = arith.constant 1 : index
    %c0_10 = arith.constant 0 : index
    %14 = vector.load %arg3[%c0_8, %c0_9, %13, %c1, %c0_10] : memref<1x1x18x18x4xf32, #tpu.memory_space<vmem>>, vector<1x1x8x16x4xf32>
    %15 = vector.shape_cast %14 : vector<1x1x8x16x4xf32> to vector<8x16x4xf32>
    %16 = vector.shape_cast %15 : vector<8x16x4xf32> to vector<128x4xf32>
    %c1_11 = arith.constant 1 : index
    %c0_12 = arith.constant 0 : index
    %c0_13 = arith.constant 0 : index
    %17 = vector.load %arg4[%c1_11, %c0_12, %c0_13] : memref<9x4x128xf32, #tpu.memory_space<vmem>>, vector<1x4x128xf32>
    %18 = vector.shape_cast %17 : vector<1x4x128xf32> to vector<4x128xf32>
    %cst_14 = arith.constant dense<0.000000e+00> : vector<128x128xf32>
    %19 = tpu.matmul %16, %18, %cst_14 {dimension_numbers = #tpu.dot_dimension_numbers<[1], [0], [0], [1], [0, 0, 1, 1], [], []>} : vector<128x4xf32>, vector<4x128xf32>, vector<128x128xf32> -> vector<128x128xf32>
    %20 = arith.addf %11, %19 : vector<128x128xf32>
    %c0_i32_15 = arith.constant 0 : i32
    %21 = arith.addi %1, %c0_i32_15 : i32
    %c0_16 = arith.constant 0 : index
    %c0_17 = arith.constant 0 : index
    %22 = arith.index_cast %21 : i32 to index
    %c2 = arith.constant 2 : index
    %c0_18 = arith.constant 0 : index
    %23 = vector.load %arg3[%c0_16, %c0_17, %22, %c2, %c0_18] : memref<1x1x18x18x4xf32, #tpu.memory_space<vmem>>, vector<1x1x8x16x4xf32>
    %24 = vector.shape_cast %23 : vector<1x1x8x16x4xf32> to vector<8x16x4xf32>
    %25 = vector.shape_cast %24 : vector<8x16x4xf32> to vector<128x4xf32>
    %c2_19 = arith.constant 2 : index
    %c0_20 = arith.constant 0 : index
    %c0_21 = arith.constant 0 : index
    %26 = vector.load %arg4[%c2_19, %c0_20, %c0_21] : memref<9x4x128xf32, #tpu.memory_space<vmem>>, vector<1x4x128xf32>
    %27 = vector.shape_cast %26 : vector<1x4x128xf32> to vector<4x128xf32>
    %cst_22 = arith.constant dense<0.000000e+00> : vector<128x128xf32>
    %28 = tpu.matmul %25, %27, %cst_22 {dimension_numbers = #tpu.dot_dimension_numbers<[1], [0], [0], [1], [0, 0, 1, 1], [], []>} : vector<128x4xf32>, vector<4x128xf32>, vector<128x128xf32> -> vector<128x128xf32>
    %29 = arith.addf %20, %28 : vector<128x128xf32>
    %c1_i32 = arith.constant 1 : i32
    %30 = arith.addi %1, %c1_i32 : i32
    %c0_23 = arith.constant 0 : index
    %c0_24 = arith.constant 0 : index
    %31 = arith.index_cast %30 : i32 to index
    %c0_25 = arith.constant 0 : index
    %c0_26 = arith.constant 0 : index
    %32 = vector.load %arg3[%c0_23, %c0_24, %31, %c0_25, %c0_26] : memref<1x1x18x18x4xf32, #tpu.memory_space<vmem>>, vector<1x1x8x16x4xf32>
    %33 = vector.shape_cast %32 : vector<1x1x8x16x4xf32> to vector<8x16x4xf32>
    %34 = vector.shape_cast %33 : vector<8x16x4xf32> to vector<128x4xf32>
    %c3 = arith.constant 3 : index
    %c0_27 = arith.constant 0 : index
    %c0_28 = arith.constant 0 : index
    %35 = vector.load %arg4[%c3, %c0_27, %c0_28] : memref<9x4x128xf32, #tpu.memory_space<vmem>>, vector<1x4x128xf32>
    %36 = vector.shape_cast %35 : vector<1x4x128xf32> to vector<4x128xf32>
    %cst_29 = arith.constant dense<0.000000e+00> : vector<128x128xf32>
    %37 = tpu.matmul %34, %36, %cst_29 {dimension_numbers = #tpu.dot_dimension_numbers<[1], [0], [0], [1], [0, 0, 1, 1], [], []>} : vector<128x4xf32>, vector<4x128xf32>, vector<128x128xf32> -> vector<128x128xf32>
    %38 = arith.addf %29, %37 : vector<128x128xf32>
    %c1_i32_30 = arith.constant 1 : i32
    %39 = arith.addi %1, %c1_i32_30 : i32
    %c0_31 = arith.constant 0 : index
    %c0_32 = arith.constant 0 : index
    %40 = arith.index_cast %39 : i32 to index
    %c1_33 = arith.constant 1 : index
    %c0_34 = arith.constant 0 : index
    %41 = vector.load %arg3[%c0_31, %c0_32, %40, %c1_33, %c0_34] : memref<1x1x18x18x4xf32, #tpu.memory_space<vmem>>, vector<1x1x8x16x4xf32>
    %42 = vector.shape_cast %41 : vector<1x1x8x16x4xf32> to vector<8x16x4xf32>
    %43 = vector.shape_cast %42 : vector<8x16x4xf32> to vector<128x4xf32>
    %c4 = arith.constant 4 : index
    %c0_35 = arith.constant 0 : index
    %c0_36 = arith.constant 0 : index
    %44 = vector.load %arg4[%c4, %c0_35, %c0_36] : memref<9x4x128xf32, #tpu.memory_space<vmem>>, vector<1x4x128xf32>
    %45 = vector.shape_cast %44 : vector<1x4x128xf32> to vector<4x128xf32>
    %cst_37 = arith.constant dense<0.000000e+00> : vector<128x128xf32>
    %46 = tpu.matmul %43, %45, %cst_37 {dimension_numbers = #tpu.dot_dimension_numbers<[1], [0], [0], [1], [0, 0, 1, 1], [], []>} : vector<128x4xf32>, vector<4x128xf32>, vector<128x128xf32> -> vector<128x128xf32>
    %47 = arith.addf %38, %46 : vector<128x128xf32>
    %c1_i32_38 = arith.constant 1 : i32
    %48 = arith.addi %1, %c1_i32_38 : i32
    %c0_39 = arith.constant 0 : index
    %c0_40 = arith.constant 0 : index
    %49 = arith.index_cast %48 : i32 to index
    %c2_41 = arith.constant 2 : index
    %c0_42 = arith.constant 0 : index
    %50 = vector.load %arg3[%c0_39, %c0_40, %49, %c2_41, %c0_42] : memref<1x1x18x18x4xf32, #tpu.memory_space<vmem>>, vector<1x1x8x16x4xf32>
    %51 = vector.shape_cast %50 : vector<1x1x8x16x4xf32> to vector<8x16x4xf32>
    %52 = vector.shape_cast %51 : vector<8x16x4xf32> to vector<128x4xf32>
    %c5 = arith.constant 5 : index
    %c0_43 = arith.constant 0 : index
    %c0_44 = arith.constant 0 : index
    %53 = vector.load %arg4[%c5, %c0_43, %c0_44] : memref<9x4x128xf32, #tpu.memory_space<vmem>>, vector<1x4x128xf32>
    %54 = vector.shape_cast %53 : vector<1x4x128xf32> to vector<4x128xf32>
    %cst_45 = arith.constant dense<0.000000e+00> : vector<128x128xf32>
    %55 = tpu.matmul %52, %54, %cst_45 {dimension_numbers = #tpu.dot_dimension_numbers<[1], [0], [0], [1], [0, 0, 1, 1], [], []>} : vector<128x4xf32>, vector<4x128xf32>, vector<128x128xf32> -> vector<128x128xf32>
    %56 = arith.addf %47, %55 : vector<128x128xf32>
    %c2_i32 = arith.constant 2 : i32
    %57 = arith.addi %1, %c2_i32 : i32
    %c0_46 = arith.constant 0 : index
    %c0_47 = arith.constant 0 : index
    %58 = arith.index_cast %57 : i32 to index
    %c0_48 = arith.constant 0 : index
    %c0_49 = arith.constant 0 : index
    %59 = vector.load %arg3[%c0_46, %c0_47, %58, %c0_48, %c0_49] : memref<1x1x18x18x4xf32, #tpu.memory_space<vmem>>, vector<1x1x8x16x4xf32>
    %60 = vector.shape_cast %59 : vector<1x1x8x16x4xf32> to vector<8x16x4xf32>
    %61 = vector.shape_cast %60 : vector<8x16x4xf32> to vector<128x4xf32>
    %c6 = arith.constant 6 : index
    %c0_50 = arith.constant 0 : index
    %c0_51 = arith.constant 0 : index
    %62 = vector.load %arg4[%c6, %c0_50, %c0_51] : memref<9x4x128xf32, #tpu.memory_space<vmem>>, vector<1x4x128xf32>
    %63 = vector.shape_cast %62 : vector<1x4x128xf32> to vector<4x128xf32>
    %cst_52 = arith.constant dense<0.000000e+00> : vector<128x128xf32>
    %64 = tpu.matmul %61, %63, %cst_52 {dimension_numbers = #tpu.dot_dimension_numbers<[1], [0], [0], [1], [0, 0, 1, 1], [], []>} : vector<128x4xf32>, vector<4x128xf32>, vector<128x128xf32> -> vector<128x128xf32>
    %65 = arith.addf %56, %64 : vector<128x128xf32>
    %c2_i32_53 = arith.constant 2 : i32
    %66 = arith.addi %1, %c2_i32_53 : i32
    %c0_54 = arith.constant 0 : index
    %c0_55 = arith.constant 0 : index
    %67 = arith.index_cast %66 : i32 to index
    %c1_56 = arith.constant 1 : index
    %c0_57 = arith.constant 0 : index
    %68 = vector.load %arg3[%c0_54, %c0_55, %67, %c1_56, %c0_57] : memref<1x1x18x18x4xf32, #tpu.memory_space<vmem>>, vector<1x1x8x16x4xf32>
    %69 = vector.shape_cast %68 : vector<1x1x8x16x4xf32> to vector<8x16x4xf32>
    %70 = vector.shape_cast %69 : vector<8x16x4xf32> to vector<128x4xf32>
    %c7 = arith.constant 7 : index
    %c0_58 = arith.constant 0 : index
    %c0_59 = arith.constant 0 : index
    %71 = vector.load %arg4[%c7, %c0_58, %c0_59] : memref<9x4x128xf32, #tpu.memory_space<vmem>>, vector<1x4x128xf32>
    %72 = vector.shape_cast %71 : vector<1x4x128xf32> to vector<4x128xf32>
    %cst_60 = arith.constant dense<0.000000e+00> : vector<128x128xf32>
    %73 = tpu.matmul %70, %72, %cst_60 {dimension_numbers = #tpu.dot_dimension_numbers<[1], [0], [0], [1], [0, 0, 1, 1], [], []>} : vector<128x4xf32>, vector<4x128xf32>, vector<128x128xf32> -> vector<128x128xf32>
    %74 = arith.addf %65, %73 : vector<128x128xf32>
    %c2_i32_61 = arith.constant 2 : i32
    %75 = arith.addi %1, %c2_i32_61 : i32
    %c0_62 = arith.constant 0 : index
    %c0_63 = arith.constant 0 : index
    %76 = arith.index_cast %75 : i32 to index
    %c2_64 = arith.constant 2 : index
    %c0_65 = arith.constant 0 : index
    %77 = vector.load %arg3[%c0_62, %c0_63, %76, %c2_64, %c0_65] : memref<1x1x18x18x4xf32, #tpu.memory_space<vmem>>, vector<1x1x8x16x4xf32>
    %78 = vector.shape_cast %77 : vector<1x1x8x16x4xf32> to vector<8x16x4xf32>
    %79 = vector.shape_cast %78 : vector<8x16x4xf32> to vector<128x4xf32>
    %c8 = arith.constant 8 : index
    %c0_66 = arith.constant 0 : index
    %c0_67 = arith.constant 0 : index
    %80 = vector.load %arg4[%c8, %c0_66, %c0_67] : memref<9x4x128xf32, #tpu.memory_space<vmem>>, vector<1x4x128xf32>
    %81 = vector.shape_cast %80 : vector<1x4x128xf32> to vector<4x128xf32>
    %cst_68 = arith.constant dense<0.000000e+00> : vector<128x128xf32>
    %82 = tpu.matmul %79, %81, %cst_68 {dimension_numbers = #tpu.dot_dimension_numbers<[1], [0], [0], [1], [0, 0, 1, 1], [], []>} : vector<128x4xf32>, vector<4x128xf32>, vector<128x128xf32> -> vector<128x128xf32>
    %83 = arith.addf %74, %82 : vector<128x128xf32>
    %c0_69 = arith.constant 0 : index
    %c0_70 = arith.constant 0 : index
    %84 = vector.load %arg5[%c0_69, %c0_70] : memref<1x128xf32, #tpu.memory_space<vmem>>, vector<1x128xf32>
    %85 = vector.shape_cast %84 : vector<1x128xf32> to vector<128xf32>
    %86 = vector.shape_cast %85 : vector<128xf32> to vector<1x128xf32>
    %87 = vector.broadcast %86 : vector<1x128xf32> to vector<128x128xf32>
    %88 = arith.addf %83, %87 : vector<128x128xf32>
    %89 = vector.shape_cast %88 : vector<128x128xf32> to vector<1x8x16x128xf32>
    %c0_71 = arith.constant 0 : index
    %c0_72 = arith.constant 0 : index
    %c0_73 = arith.constant 0 : index
    %c0_74 = arith.constant 0 : index
    %90 = vector.load %arg6[%c0_71, %c0_72, %c0_73, %c0_74] : memref<1x8x16x128xf32, #tpu.memory_space<vmem>>, vector<1x8x16x128xf32>
    tpu.vector_store %arg6[%c0_71, %c0_72, %c0_73, %c0_74], %89 {strides = array<i32>} : memref<1x8x16x128xf32, #tpu.memory_space<vmem>>, vector<1x8x16x128xf32>,
    return
  }
  func.func @transform_0(%arg0: i32, %arg1: i32, %arg2: i32) -> (i32, i32, i32, i32, i32) {
    %c0_i32 = arith.constant 0 : i32
    %c0_i32_0 = arith.constant 0 : i32
    %c0_i32_1 = arith.constant 0 : i32
    %c0_i32_2 = arith.constant 0 : i32
    %c0_i32_3 = arith.constant 0 : i32
    return %arg0, %c0_i32, %c0_i32_0, %c0_i32_1, %c0_i32_2 : i32, i32, i32, i32, i32
  }
  func.func @transform_1(%arg0: i32, %arg1: i32, %arg2: i32) -> (i32, i32, i32) {
    %c0_i32 = arith.constant 0 : i32
    %c0_i32_0 = arith.constant 0 : i32
    %c0_i32_1 = arith.constant 0 : i32
    return %c0_i32, %c0_i32_0, %arg2 : i32, i32, i32
  }
  func.func @transform_2(%arg0: i32, %arg1: i32, %arg2: i32) -> (i32, i32) {
    %c0_i32 = arith.constant 0 : i32
    %c0_i32_0 = arith.constant 0 : i32
    return %c0_i32, %arg2 : i32, i32
  }
  func.func @transform_3(%arg0: i32, %arg1: i32, %arg2: i32) -> (i32, i32, i32, i32) {
    %c0_i32 = arith.constant 0 : i32
    %c0_i32_0 = arith.constant 0 : i32
    return %arg0, %arg1, %c0_i32, %arg2 : i32, i32, i32, i32
  }
}

</mosaic_0001>

<llo_original>
// kernel: tpu_custom_call.1
$region0: #{tpu_custom_call.1}
  #allocation0 [shape = 'u32[]', space=smem, size = 0x4, offset = 0x4, fixed_abs, tag = 'smem constant byte address 0x4 - core index']
  #allocation1 [shape = 'u32[144,128]{1,0:T(1,128)}', space=vmem, size = 0x12000, scoped, tag = 'internal scratch']
  %s0 = inlined_call_operand.vmem [shape: f32[2,1,18,18,4], index: 0, kind: input, shape index: {}]
  %s1 = inlined_call_operand.vmem [shape: f32[9,4,128], index: 1, kind: input, shape index: {}]
  %s2 = inlined_call_operand.vmem [shape: f32[1,128], index: 2, kind: input, shape index: {}]
  %s3 = inlined_call_operand.hbm [shape: f32[2,16,16,128], index: 3, kind: output, shape index: {}]
  %s4 = sld [smem:[#allocation0]]
  $region45: #{tpu_custom_call.1} parent=0
    _
  %s6 = ssub.s32 1, %s4
  %s7 = scalar_select 0, %s6, %s4
  $region1: #{tpu_custom_call.1} parent=0
    #allocation2 [shape = 'u8[131072]{0}', space=vmem, size = 0x20000, scoped, tag = 'output window, operand 0']
    #allocation3 [shape = 's32[2]{0}', space=sflag, size = 0x8, scoped, tag = 'scoped memory for tpu_custom_call.1']
    %8 = vsyncpa [#allocation3], 0
    %s9 = scalar_lea.sflag [#allocation3], 1
    %10 = vsyncpa %s9, 0
    loop: start=0, step=1, limit=6
    $region2: #{tpu_custom_call.1} parent=1 // loop_pre_header
      _
    $region3: #{tpu_custom_call.1} parent=1 // loop_header
      %s12 = sphi 0, %s16
      %p13 = scmp.ge.s32.totalorder %s12, 6
      %s19 = sphi 0, %s38
      %s20 = sphi 0, %s34
      %s21 = sphi 0, %s30
      %s22 = sphi 0, %s19
      %s23 = sphi 0, %s20
      %s24 = sphi 0, %s21
      %s25 = sphi 0, %s22
      %s26 = sphi 0, %s23
      %s27 = sphi 0, %s24
      %s41 = sphi 0, %s43
      %s44 = sphi 0, %s41
      %s45 = sphi 0, %s44
      %s61 = sphi 0, %s45
      %s67 = sphi 0, %s69
      %s70 = sphi 0, %s67
      %s71 = sphi 0, %s70
      %s87 = sphi 0, %s71
      %s93 = sphi 0, %s95
      %s96 = sphi 0, %s93
      %s97 = sphi 0, %s96
      %s113 = sphi 0, %s97
      %s123 = sphi 0, %s125
      %s126 = sphi 0, %s123
      %s127 = sphi 0, %s126
      %s143 = sphi 0, %s127
    $region4: #{tpu_custom_call.1} parent=1 // loop_header_branch
      %15 = sbr.rel (%p13) target = $region8
    $region5: #{tpu_custom_call.1} parent=1 // loop_body
      %s17 = ssub.s32 %s12, 1
      %s18 = ssub.s32 %s12, 2
      %s28 = sadd.s32 1, %s21
      %p29 = scmp.ge.s32.totalorder %s28, 1
      %s30 = scalar_select %p29, 0, %s28
      %s31 = sadd.s32 1, %s20
      %s32 = scalar_select %p29, %s31, %s20
      %p33 = scmp.ge.s32.totalorder %s32, 2
      %s34 = scalar_select %p33, 0, %s32
      %s35 = sadd.s32 1, %s19
      %s36 = scalar_select %p33, %s35, %s19
      %p37 = scmp.ge.s32.totalorder %s36, 2
      %s38 = scalar_select %p37, 0, %s36
      %s39 = ssub.s32 %s19, %s38
      %p40 = scmp.eq.s32.totalorder %s39, 0
      %s42 = sadd.s32 %s41, 1
      %s43 = scalar_select %p40, %s41, %s42
      %p46 = pneg %p40
      %p47 = scmp.eq.s32.totalorder %s12, 3
      %p48 = por %p46, %p47
      %p49 = scmp.ne.s32.totalorder %s41, %s44
      %p50 = scmp.eq.s32.totalorder %s12, 0
      %p51 = por %p49, %p50
      %p52 = scmp.ne.s32.totalorder %s41, %s44
      %p53 = scmp.eq.s32.totalorder %s17, 3
      %p54 = por %p52, %p53
      %p55 = scmp.ne.s32.totalorder %s44, %s45
      %p56 = scmp.eq.s32.totalorder %s17, 0
      %p57 = por %p55, %p56
      %p58 = scmp.ne.s32.totalorder %s44, %s45
      %p59 = scmp.eq.s32.totalorder %s18, 3
      %p60 = por %p58, %p59
      %p62 = scmp.ne.s32.totalorder %s45, %s61
      %p63 = scmp.eq.s32.totalorder %s18, 0
      %p64 = por %p62, %p63
      %s65 = ssub.s32 %s21, %s30
      %p66 = scmp.eq.s32.totalorder %s65, 0
      %s68 = sadd.s32 %s67, 1
      %s69 = scalar_select %p66, %s67, %s68
      %p72 = pneg %p66
      %p73 = scmp.eq.s32.totalorder %s12, 3
      %p74 = por %p72, %p73
      %p75 = scmp.ne.s32.totalorder %s67, %s70
      %p76 = scmp.eq.s32.totalorder %s12, 0
      %p77 = por %p75, %p76
      %p78 = scmp.ne.s32.totalorder %s67, %s70
      %p79 = scmp.eq.s32.totalorder %s17, 3
      %p80 = por %p78, %p79
      %p81 = scmp.ne.s32.totalorder %s70, %s71
      %p82 = scmp.eq.s32.totalorder %s17, 0
      %p83 = por %p81, %p82
      %p84 = scmp.ne.s32.totalorder %s70, %s71
      %p85 = scmp.eq.s32.totalorder %s18, 3
      %p86 = por %p84, %p85
      %p88 = scmp.ne.s32.totalorder %s71, %s87
      %p89 = scmp.eq.s32.totalorder %s18, 0
      %p90 = por %p88, %p89
      %s91 = ssub.s32 %s21, %s30
      %p92 = scmp.eq.s32.totalorder %s91, 0
      %s94 = sadd.s32 %s93, 1
      %s95 = scalar_select %p92, %s93, %s94
      %p98 = pneg %p92
      %p99 = scmp.eq.s32.totalorder %s12, 3
      %p100 = por %p98, %p99
      %p101 = scmp.ne.s32.totalorder %s93, %s96
      %p102 = scmp.eq.s32.totalorder %s12, 0
      %p103 = por %p101, %p102
      %p104 = scmp.ne.s32.totalorder %s93, %s96
      %p105 = scmp.eq.s32.totalorder %s17, 3
      %p106 = por %p104, %p105
      %p107 = scmp.ne.s32.totalorder %s96, %s97
      %p108 = scmp.eq.s32.totalorder %s17, 0
      %p109 = por %p107, %p108
      %p110 = scmp.ne.s32.totalorder %s96, %s97
      %p111 = scmp.eq.s32.totalorder %s18, 3
      %p112 = por %p110, %p111
      %p114 = scmp.ne.s32.totalorder %s97, %s113
      %p115 = scmp.eq.s32.totalorder %s18, 0
      %p116 = por %p114, %p115
      %s117 = ssub.s32 %s19, %s38
      %s118 = ssub.s32 %s20, %s34
      %s119 = sor.u32 %s117, %s118
      %s120 = ssub.s32 %s21, %s30
      %s121 = sor.u32 %s119, %s120
      %p122 = scmp.eq.s32.totalorder %s121, 0
      %s124 = sadd.s32 %s123, 1
      %s125 = scalar_select %p122, %s123, %s124
      %p128 = pneg %p122
      %p129 = scmp.eq.s32.totalorder %s12, 3
      %p130 = por %p128, %p129
      %p131 = scmp.ne.s32.totalorder %s123, %s126
      %p132 = scmp.eq.s32.totalorder %s12, 0
      %p133 = por %p131, %p132
      %p134 = scmp.ne.s32.totalorder %s123, %s126
      %p135 = scmp.eq.s32.totalorder %s17, 3
      %p136 = por %p134, %p135
      %p137 = scmp.ne.s32.totalorder %s126, %s127
      %p138 = scmp.eq.s32.totalorder %s17, 0
      %p139 = por %p137, %p138
      %p140 = scmp.ne.s32.totalorder %s126, %s127
      %p141 = scmp.eq.s32.totalorder %s18, 3
      %p142 = por %p140, %p141
      %p144 = scmp.ne.s32.totalorder %s127, %s143
      %p145 = scmp.eq.s32.totalorder %s18, 0
      %p146 = por %p144, %p145
      %p147 = scmp.le.s32.totalorder 1, %s12
      %p148 = scmp.lt.s32.totalorder %s12, 5
      %p149 = pnand %p147, %p148
      %p150 = pneg %p149
      // Predicated region
      $region9: #{tpu_custom_call.1} parent=5 // pred_check
        _
      $region10: #{tpu_custom_call.1} parent=5 // pred_check_branch
        %152 = sbr.rel (%p149) target = $region12
      $region11: #{tpu_custom_call.1} parent=5 // pred_region
        %s153 = ssub.s32 %s12, 1
        // Predicated region
        $region13: #{tpu_custom_call.1} parent=11 // pred_check
          %p154 = pneg %p83
        $region14: #{tpu_custom_call.1} parent=11 // pred_check_branch
          %156 = sbr.rel (%p154) target = $region16
        $region15: #{tpu_custom_call.1} parent=11 // pred_region
          %p157 = scmp.lt.s32.totalorder %s24, 0
          %s158 = scalar_select %p157, %s24, 0
          %s159 = smul.addr %s158, 4
          %s160 = scalar_lea.vmem %s1, %s159
        $region16: #{tpu_custom_call.1} parent=11 // pred_fallthru
          _
        // Predicated region
        $region17: #{tpu_custom_call.1} parent=11 // pred_check
          %p161 = pneg %p109
        $region18: #{tpu_custom_call.1} parent=11 // pred_check_branch
          %163 = sbr.rel (%p161) target = $region20
        $region19: #{tpu_custom_call.1} parent=11 // pred_region
          %p164 = scmp.lt.s32.totalorder %s24, 0
          %s165 = scalar_select %p164, %s24, 0
          %s166 = scalar_lea.vmem %s2, %s165
        $region20: #{tpu_custom_call.1} parent=11 // pred_fallthru
          _
      $region12: #{tpu_custom_call.1} parent=5 // pred_fallthru
        _
      %p167 = scmp.lt.s32.totalorder %s12, 4
      // Predicated region
      $region21: #{tpu_custom_call.1} parent=5 // pred_check
        %p168 = pneg %p167
      $region22: #{tpu_custom_call.1} parent=5 // pred_check_branch
        %170 = sbr.rel (%p168) target = $region24
      $region23: #{tpu_custom_call.1} parent=5 // pred_region
        // Predicated region
        $region25: #{tpu_custom_call.1} parent=23 // pred_check
          %p171 = pneg %p51
        $region26: #{tpu_custom_call.1} parent=23 // pred_check_branch
          %173 = sbr.rel (%p171) target = $region28
        $region27: #{tpu_custom_call.1} parent=23 // pred_region
          %p174 = scmp.lt.s32.totalorder %s19, 1
          %s175 = scalar_select %p174, %s19, 1
          %s176 = smul.addr %s175, 54
          %s177 = smul.addr %s176, 8
          %s178 = scalar_lea.vmem %s0, %s177
        $region28: #{tpu_custom_call.1} parent=23 // pred_fallthru
          _
      $region24: #{tpu_custom_call.1} parent=5 // pred_fallthru
        _
      %p179 = scmp.le.s32.totalorder 1, %s12
      %p180 = scmp.lt.s32.totalorder %s12, 5
      %p181 = pnand %p179, %p180
      %p182 = pneg %p181
      // Predicated region
      $region29: #{tpu_custom_call.1} parent=5 // pred_check
        _
      $region30: #{tpu_custom_call.1} parent=5 // pred_check_branch
        %184 = sbr.rel (%p181) target = $region32
      $region31: #{tpu_custom_call.1} parent=5 // pred_region
        %s185 = ssub.s32 %s12, 1
        %p186 = scmp.lt.s32.totalorder %s22, 1
        %s187 = scalar_select %p186, %s22, 1
        %s188 = smul.addr %s187, 54
        %s189 = smul.addr %s188, 8
        %s190 = scalar_lea.vmem %s0, %s189
        %p191 = pneg %p57
        %p192 = pneg %p54
        %p193 = scmp.lt.s32.totalorder %s24, 0
        %s194 = scalar_select %p193, %s24, 0
        %s195 = smul.addr %s194, 4
        %s196 = scalar_lea.vmem %s1, %s195
        %p197 = pneg %p83
        %p198 = pneg %p80
        %p199 = scmp.lt.s32.totalorder %s24, 0
        %s200 = scalar_select %p199, %s24, 0
        %s201 = scalar_lea.vmem %s2, %s200
        %p202 = pneg %p109
        %p203 = pneg %p106
        %p204 = pneg %p139
        %p205 = pneg %p136
        %s206 = sand.u32 %s126, 1
        %s207 = scalar_lea.sflag [#allocation3], %s206
        %s208 = sand.u32 %s126, 1
        %s209 = smul.addr %s208, 128
        %s210 = scalar_lea.vmem [#allocation2], %s209
        %p211 = scmp.lt.s32.totalorder %s22, 1
        %s212 = scalar_select %p211, %s22, 1
        %s213 = smul.addr %s212, 54
        %s214 = smul.addr %s213, 8
        %s215 = scalar_lea.vmem %s0, %s214
        %p216 = scmp.lt.s32.totalorder %s24, 0
        %s217 = scalar_select %p216, %s24, 0
        %s218 = smul.addr %s217, 4
        %s219 = scalar_lea.vmem %s1, %s218
        %p220 = scmp.lt.s32.totalorder %s24, 0
        %s221 = scalar_select %p220, %s24, 0
        %s222 = scalar_lea.vmem %s2, %s221
        %s223 = smul.u32 8, %s23
        %s224 = smul.u32 %s23, 8
        %s225 = smul.u32 %s224, 24
        %s226 = scalar_lea.vmem %s215, %s225
        %v227 = vld [vmem:[%s226] sm:$0xff]
        %v228 = vld [vmem:[%s226 + $0x8] sm:$0xff]
        %v229 = vld [vmem:[%s226 + $0x18] sm:$0xff]
        %v230 = vld [vmem:[%s226 + $0x20] sm:$0xff]
        %v231 = vld [vmem:[%s226 + $0x30] sm:$0xff]
        %v232 = vld [vmem:[%s226 + $0x38] sm:$0xff]
        %v233 = vld [vmem:[%s226 + $0x48] sm:$0xff]
        %v234 = vld [vmem:[%s226 + $0x50] sm:$0xff]
        %v235 = vld [vmem:[%s226 + $0x60] sm:$0xff]
        %v236 = vld [vmem:[%s226 + $0x68] sm:$0xff]
        %v237 = vld [vmem:[%s226 + $0x78] sm:$0xff]
        %v238 = vld [vmem:[%s226 + $0x80] sm:$0xff]
        %v239 = vld [vmem:[%s226 + $0x90] sm:$0xff]
        %v240 = vld [vmem:[%s226 + $0x98] sm:$0xff]
        %v241 = vld [vmem:[%s226 + $0xa8] sm:$0xff]
        %v242 = vld [vmem:[%s226 + $0xb0] sm:$0xff]
        %v243 = vld [vmem:[%s219] sm:$0xf]
        %v244 = vld [vmem:[%s226 + $0x1] sm:$0xff]
        %v245 = vld [vmem:[%s226 + $0x9] sm:$0xff]
        %v246 = vld [vmem:[%s226 + $0x19] sm:$0xff]
        %v247 = vld [vmem:[%s226 + $0x21] sm:$0xff]
        %v248 = vld [vmem:[%s226 + $0x31] sm:$0xff]
        %v249 = vld [vmem:[%s226 + $0x39] sm:$0xff]
        %v250 = vld [vmem:[%s226 + $0x49] sm:$0xff]
        %v251 = vld [vmem:[%s226 + $0x51] sm:$0xff]
        %v252 = vld [vmem:[%s226 + $0x61] sm:$0xff]
        %v253 = vld [vmem:[%s226 + $0x69] sm:$0xff]
        %v254 = vld [vmem:[%s226 + $0x79] sm:$0xff]
        %v255 = vld [vmem:[%s226 + $0x81] sm:$0xff]
        %v256 = vld [vmem:[%s226 + $0x91] sm:$0xff]
        %v257 = vld [vmem:[%s226 + $0x99] sm:$0xff]
        %v258 = vld [vmem:[%s226 + $0xa9] sm:$0xff]
        %v259 = vld [vmem:[%s226 + $0xb1] sm:$0xff]
        %s260 = scalar_lea.vmem %s219, 4
        %v261 = vld [vmem:[%s260] sm:$0xf]
        %vm262 = vcmask 31744
        %v264 = vsel %vm262, %v244, 0
        %v267 = vsel %vm262, %v245, 0
        %v270 = vsel %vm262, %v246, 0
        %v273 = vsel %vm262, %v247, 0
        %v276 = vsel %vm262, %v248, 0
        %v279 = vsel %vm262, %v249, 0
        %v282 = vsel %vm262, %v250, 0
        %v285 = vsel %vm262, %v251, 0
        %v288 = vsel %vm262, %v252, 0
        %v291 = vsel %vm262, %v253, 0
        %v294 = vsel %vm262, %v254, 0
        %v297 = vsel %vm262, %v255, 0
        %v300 = vsel %vm262, %v256, 0
        %v303 = vsel %vm262, %v257, 0
        %v306 = vsel %vm262, %v258, 0
        %v309 = vsel %vm262, %v259, 0
        %vm311 = vcmask 1043456
        %v313 = vsel %vm311, %v261, 0
        %315 = vmatprep.subr.mxu0 0.0
        %316 = vmatpush1.msra.mxu0 0.0
        %317 = vmatprep.subr.mxu0 0.0
        %318 = vmatpush1.msra.mxu0 0.0
        %319 = vmatprep.subr.mxu0 0.0
        %320 = vmatpush1.msra.mxu0 0.0
        %321 = vmatprep.subr.mxu0 0.0
        %322 = vmatpush1.msra.mxu0 0.0
        %323 = vmatprep.subr.mxu0 0.0
        %324 = vmatpush1.msra.mxu0 0.0
        %325 = vmatprep.subr.mxu0 0.0
        %326 = vmatpush1.msra.mxu0 0.0
        %327 = vmatprep.subr.mxu0 0.0
        %328 = vmatpush1.msra.mxu0 0.0
        %329 = vmatprep.subr.mxu0 0.0
        %330 = vmatpush1.msra.mxu0 0.0
        %331 = vmatprep.subr.mxu0 0.0
        %332 = vmatpush1.msra.mxu0 0.0
        %333 = vmatprep.subr.mxu0 0.0
        %334 = vmatpush1.msra.mxu0 0.0
        %335 = vmatprep.subr.mxu0 0.0
        %336 = vmatpush1.msra.mxu0 0.0
        %337 = vmatprep.subr.mxu0 0.0
        %338 = vmatpush1.msra.mxu0 0.0
        %339 = vmatprep.subr.mxu0 0.0
        %340 = vmatpush1.msra.mxu0 0.0
        %341 = vmatprep.subr.mxu0 0.0
        %342 = vmatpush1.msra.mxu0 0.0
        %343 = vmatprep.subr.mxu0 0.0
        %344 = vmatpush1.msra.mxu0 0.0
        %345 = vmatprep.subr.mxu0 0.0
        %346 = vmatpush1.msra.mxu0 %v313
        %347 = vmatprep.subr.mxu0 0.0
        %348 = vmatpush2.msra.mxu0 0.0
        %349 = vmatprep.subr.mxu0 0.0
        %350 = vmatpush2.msra.mxu0 0.0
        %351 = vmatprep.subr.mxu0 0.0
        %352 = vmatpush2.msra.mxu0 0.0
        %353 = vmatprep.subr.mxu0 0.0
        %354 = vmatpush2.msra.mxu0 0.0
        %355 = vmatprep.subr.mxu0 0.0
        %356 = vmatpush2.msra.mxu0 0.0
        %357 = vmatprep.subr.mxu0 0.0
        %358 = vmatpush2.msra.mxu0 0.0
        %359 = vmatprep.subr.mxu0 0.0
        %360 = vmatpush2.msra.mxu0 0.0
        %361 = vmatprep.subr.mxu0 0.0
        %362 = vmatpush2.msra.mxu0 0.0
        %363 = vmatprep.subr.mxu0 0.0
        %364 = vmatpush2.msra.mxu0 0.0
        %365 = vmatprep.subr.mxu0 0.0
        %366 = vmatpush2.msra.mxu0 0.0
        %367 = vmatprep.subr.mxu0 0.0
        %368 = vmatpush2.msra.mxu0 0.0
        %369 = vmatprep.subr.mxu0 0.0
        %370 = vmatpush2.msra.mxu0 0.0
        %371 = vmatprep.subr.mxu0 0.0
        %372 = vmatpush2.msra.mxu0 0.0
        %373 = vmatprep.subr.mxu0 0.0
        %374 = vmatpush2.msra.mxu0 0.0
        %375 = vmatprep.subr.mxu0 0.0
        %376 = vmatpush2.msra.mxu0 0.0
        %377 = vmatprep.subr.mxu0 0.0
        %378 = vmatpush2.msra.mxu0 0.0
        %379 = vmatprep.mubr.f32.mxu0 0.0
        %380 = vmatmul.mubr.f32.gmra.mxu0 %v264
        %v381 = vpop.f32.mrf.mxu0
        %v382 = vadd.f32 0.0, %v381
        %v383 = vpop.f32.mrf.mxu0
        %384 = vmatprep.mubr.f32.mxu0 0.0
        %385 = vmatmul.mubr.f32.gmra.mxu0 %v267
        %v386 = vpop.f32.mrf.mxu0
        %v387 = vadd.f32 0.0, %v386
        %v388 = vpop.f32.mrf.mxu0
        %389 = vmatprep.mubr.f32.mxu0 0.0
        %390 = vmatmul.mubr.f32.gmra.mxu0 %v270
        %v391 = vpop.f32.mrf.mxu0
        %v392 = vadd.f32 0.0, %v391
        %v393 = vpop.f32.mrf.mxu0
        %394 = vmatprep.mubr.f32.mxu0 0.0
        %395 = vmatmul.mubr.f32.gmra.mxu0 %v273
        %v396 = vpop.f32.mrf.mxu0
        %v397 = vadd.f32 0.0, %v396
        %v398 = vpop.f32.mrf.mxu0
        %399 = vmatprep.mubr.f32.mxu0 0.0
        %400 = vmatmul.mubr.f32.gmra.mxu0 %v276
        %v401 = vpop.f32.mrf.mxu0
        %v402 = vadd.f32 0.0, %v401
        %v403 = vpop.f32.mrf.mxu0
        %404 = vmatprep.mubr.f32.mxu0 0.0
        %405 = vmatmul.mubr.f32.gmra.mxu0 %v279
        %v406 = vpop.f32.mrf.mxu0
        %v407 = vadd.f32 0.0, %v406
        %v408 = vpop.f32.mrf.mxu0
        %409 = vmatprep.mubr.f32.mxu0 0.0
        %410 = vmatmul.mubr.f32.gmra.mxu0 %v282
        %v411 = vpop.f32.mrf.mxu0
        %v412 = vadd.f32 0.0, %v411
        %v413 = vpop.f32.mrf.mxu0
        %414 = vmatprep.mubr.f32.mxu0 0.0
        %415 = vmatmul.mubr.f32.gmra.mxu0 %v285
        %v416 = vpop.f32.mrf.mxu0
        %v417 = vadd.f32 0.0, %v416
        %v418 = vpop.f32.mrf.mxu0
        %419 = vmatprep.mubr.f32.mxu0 0.0
        %420 = vmatmul.mubr.f32.gmra.mxu0 %v288
        %v421 = vpop.f32.mrf.mxu0
        %v422 = vadd.f32 0.0, %v421
        %v423 = vpop.f32.mrf.mxu0
        %424 = vmatprep.mubr.f32.mxu0 0.0
        %425 = vmatmul.mubr.f32.gmra.mxu0 %v291
        %v426 = vpop.f32.mrf.mxu0
        %v427 = vadd.f32 0.0, %v426
        %v428 = vpop.f32.mrf.mxu0
        %429 = vmatprep.mubr.f32.mxu0 0.0
        %430 = vmatmul.mubr.f32.gmra.mxu0 %v294
        %v431 = vpop.f32.mrf.mxu0
        %v432 = vadd.f32 0.0, %v431
        %v433 = vpop.f32.mrf.mxu0
        %434 = vmatprep.mubr.f32.mxu0 0.0
        %435 = vmatmul.mubr.f32.gmra.mxu0 %v297
        %v436 = vpop.f32.mrf.mxu0
        %v437 = vadd.f32 0.0, %v436
        %v438 = vpop.f32.mrf.mxu0
        %439 = vmatprep.mubr.f32.mxu0 0.0
        %440 = vmatmul.mubr.f32.gmra.mxu0 %v300
        %v441 = vpop.f32.mrf.mxu0
        %v442 = vadd.f32 0.0, %v441
        %v443 = vpop.f32.mrf.mxu0
        %444 = vmatprep.mubr.f32.mxu0 0.0
        %445 = vmatmul.mubr.f32.gmra.mxu0 %v303
        %v446 = vpop.f32.mrf.mxu0
        %v447 = vadd.f32 0.0, %v446
        %v448 = vpop.f32.mrf.mxu0
        %449 = vmatprep.mubr.f32.mxu0 0.0
        %450 = vmatmul.mubr.f32.gmra.mxu0 %v306
        %v451 = vpop.f32.mrf.mxu0
        %v452 = vadd.f32 0.0, %v451
        %v453 = vpop.f32.mrf.mxu0
        %454 = vmatprep.mubr.f32.mxu0 0.0
        %455 = vmatmul.mubr.f32.gmra.mxu0 %v309
        %v456 = vpop.f32.mrf.mxu0
        %v457 = vadd.f32 0.0, %v456
        %v458 = vpop.f32.mrf.mxu0
        %459 = vdwg.mxu0
        %v461 = vsel %vm262, %v227, 0
        %v464 = vsel %vm262, %v228, 0
        %v467 = vsel %vm262, %v229, 0
        %v470 = vsel %vm262, %v230, 0
        %v473 = vsel %vm262, %v231, 0
        %v476 = vsel %vm262, %v232, 0
        %v479 = vsel %vm262, %v233, 0
        %v482 = vsel %vm262, %v234, 0
        %v485 = vsel %vm262, %v235, 0
        %v488 = vsel %vm262, %v236, 0
        %v491 = vsel %vm262, %v237, 0
        %v494 = vsel %vm262, %v238, 0
        %v497 = vsel %vm262, %v239, 0
        %v500 = vsel %vm262, %v240, 0
        %v503 = vsel %vm262, %v241, 0
        %v506 = vsel %vm262, %v242, 0
        %v509 = vsel %vm311, %v243, 0
        %511 = vmatprep.subr.mxu0 0.0
        %512 = vmatpush1.msra.mxu0 0.0
        %513 = vmatprep.subr.mxu0 0.0
        %514 = vmatpush1.msra.mxu0 0.0
        %515 = vmatprep.subr.mxu0 0.0
        %516 = vmatpush1.msra.mxu0 0.0
        %517 = vmatprep.subr.mxu0 0.0
        %518 = vmatpush1.msra.mxu0 0.0
        %519 = vmatprep.subr.mxu0 0.0
        %520 = vmatpush1.msra.mxu0 0.0
        %521 = vmatprep.subr.mxu0 0.0
        %522 = vmatpush1.msra.mxu0 0.0
        %523 = vmatprep.subr.mxu0 0.0
        %524 = vmatpush1.msra.mxu0 0.0
        %525 = vmatprep.subr.mxu0 0.0
        %526 = vmatpush1.msra.mxu0 0.0
        %527 = vmatprep.subr.mxu0 0.0
        %528 = vmatpush1.msra.mxu0 0.0
        %529 = vmatprep.subr.mxu0 0.0
        %530 = vmatpush1.msra.mxu0 0.0
        %531 = vmatprep.subr.mxu0 0.0
        %532 = vmatpush1.msra.mxu0 0.0
        %533 = vmatprep.subr.mxu0 0.0
        %534 = vmatpush1.msra.mxu0 0.0
        %535 = vmatprep.subr.mxu0 0.0
        %536 = vmatpush1.msra.mxu0 0.0
        %537 = vmatprep.subr.mxu0 0.0
        %538 = vmatpush1.msra.mxu0 0.0
        %539 = vmatprep.subr.mxu0 0.0
        %540 = vmatpush1.msra.mxu0 0.0
        %541 = vmatprep.subr.mxu0 0.0
        %542 = vmatpush1.msra.mxu0 %v509
        %543 = vmatprep.subr.mxu0 0.0
        %544 = vmatpush2.msra.mxu0 0.0
        %545 = vmatprep.subr.mxu0 0.0
        %546 = vmatpush2.msra.mxu0 0.0
        %547 = vmatprep.subr.mxu0 0.0
        %548 = vmatpush2.msra.mxu0 0.0
        %549 = vmatprep.subr.mxu0 0.0
        %550 = vmatpush2.msra.mxu0 0.0
        %551 = vmatprep.subr.mxu0 0.0
        %552 = vmatpush2.msra.mxu0 0.0
        %553 = vmatprep.subr.mxu0 0.0
        %554 = vmatpush2.msra.mxu0 0.0
        %555 = vmatprep.subr.mxu0 0.0
        %556 = vmatpush2.msra.mxu0 0.0
        %557 = vmatprep.subr.mxu0 0.0
        %558 = vmatpush2.msra.mxu0 0.0
        %559 = vmatprep.subr.mxu0 0.0
        %560 = vmatpush2.msra.mxu0 0.0
        %561 = vmatprep.subr.mxu0 0.0
        %562 = vmatpush2.msra.mxu0 0.0
        %563 = vmatprep.subr.mxu0 0.0
        %564 = vmatpush2.msra.mxu0 0.0
        %565 = vmatprep.subr.mxu0 0.0
        %566 = vmatpush2.msra.mxu0 0.0
        %567 = vmatprep.subr.mxu0 0.0
        %568 = vmatpush2.msra.mxu0 0.0
        %569 = vmatprep.subr.mxu0 0.0
        %570 = vmatpush2.msra.mxu0 0.0
        %571 = vmatprep.subr.mxu0 0.0
        %572 = vmatpush2.msra.mxu0 0.0
        %573 = vmatprep.subr.mxu0 0.0
        %574 = vmatpush2.msra.mxu0 0.0
        %575 = vmatprep.mubr.f32.mxu0 0.0
        %576 = vmatmul.mubr.f32.gmra.mxu0 %v461
        %v577 = vpop.f32.mrf.mxu0
        %v578 = vadd.f32 %v382, %v577
        %v579 = vpop.f32.mrf.mxu0
        %580 = vmatprep.mubr.f32.mxu0 0.0
        %581 = vmatmul.mubr.f32.gmra.mxu0 %v464
        %v582 = vpop.f32.mrf.mxu0
        %v583 = vadd.f32 %v387, %v582
        %v584 = vpop.f32.mrf.mxu0
        %585 = vmatprep.mubr.f32.mxu0 0.0
        %586 = vmatmul.mubr.f32.gmra.mxu0 %v467
        %v587 = vpop.f32.mrf.mxu0
        %v588 = vadd.f32 %v392, %v587
        %v589 = vpop.f32.mrf.mxu0
        %590 = vmatprep.mubr.f32.mxu0 0.0
        %591 = vmatmul.mubr.f32.gmra.mxu0 %v470
        %v592 = vpop.f32.mrf.mxu0
        %v593 = vadd.f32 %v397, %v592
        %v594 = vpop.f32.mrf.mxu0
        %595 = vmatprep.mubr.f32.mxu0 0.0
        %596 = vmatmul.mubr.f32.gmra.mxu0 %v473
        %v597 = vpop.f32.mrf.mxu0
        %v598 = vadd.f32 %v402, %v597
        %v599 = vpop.f32.mrf.mxu0
        %600 = vmatprep.mubr.f32.mxu0 0.0
        %601 = vmatmul.mubr.f32.gmra.mxu0 %v476
        %v602 = vpop.f32.mrf.mxu0
        %v603 = vadd.f32 %v407, %v602
        %v604 = vpop.f32.mrf.mxu0
        %605 = vmatprep.mubr.f32.mxu0 0.0
        %606 = vmatmul.mubr.f32.gmra.mxu0 %v479
        %v607 = vpop.f32.mrf.mxu0
        %v608 = vadd.f32 %v412, %v607
        %v609 = vpop.f32.mrf.mxu0
        %610 = vmatprep.mubr.f32.mxu0 0.0
        %611 = vmatmul.mubr.f32.gmra.mxu0 %v482
        %v612 = vpop.f32.mrf.mxu0
        %v613 = vadd.f32 %v417, %v612
        %v614 = vpop.f32.mrf.mxu0
        %615 = vmatprep.mubr.f32.mxu0 0.0
        %616 = vmatmul.mubr.f32.gmra.mxu0 %v485
        %v617 = vpop.f32.mrf.mxu0
        %v618 = vadd.f32 %v422, %v617
        %v619 = vpop.f32.mrf.mxu0
        %620 = vmatprep.mubr.f32.mxu0 0.0
        %621 = vmatmul.mubr.f32.gmra.mxu0 %v488
        %v622 = vpop.f32.mrf.mxu0
        %v623 = vadd.f32 %v427, %v622
        %v624 = vpop.f32.mrf.mxu0
        %625 = vmatprep.mubr.f32.mxu0 0.0
        %626 = vmatmul.mubr.f32.gmra.mxu0 %v491
        %v627 = vpop.f32.mrf.mxu0
        %v628 = vadd.f32 %v432, %v627
        %v629 = vpop.f32.mrf.mxu0
        %630 = vmatprep.mubr.f32.mxu0 0.0
        %631 = vmatmul.mubr.f32.gmra.mxu0 %v494
        %v632 = vpop.f32.mrf.mxu0
        %v633 = vadd.f32 %v437, %v632
        %v634 = vpop.f32.mrf.mxu0
        %635 = vmatprep.mubr.f32.mxu0 0.0
        %636 = vmatmul.mubr.f32.gmra.mxu0 %v497
        %v637 = vpop.f32.mrf.mxu0
        %v638 = vadd.f32 %v442, %v637
        %v639 = vpop.f32.mrf.mxu0
        %640 = vmatprep.mubr.f32.mxu0 0.0
        %641 = vmatmul.mubr.f32.gmra.mxu0 %v500
        %v642 = vpop.f32.mrf.mxu0
        %v643 = vadd.f32 %v447, %v642
        %v644 = vpop.f32.mrf.mxu0
        %645 = vmatprep.mubr.f32.mxu0 0.0
        %646 = vmatmul.mubr.f32.gmra.mxu0 %v503
        %v647 = vpop.f32.mrf.mxu0
        %v648 = vadd.f32 %v452, %v647
        %v649 = vpop.f32.mrf.mxu0
        %650 = vmatprep.mubr.f32.mxu0 0.0
        %651 = vmatmul.mubr.f32.gmra.mxu0 %v506
        %v652 = vpop.f32.mrf.mxu0
        %v653 = vadd.f32 %v457, %v652
        %v654 = vpop.f32.mrf.mxu0
        %655 = vdwg.mxu0
        %v656 = vld [vmem:[%s226 + $0x2] sm:$0xff]
        %v657 = vld [vmem:[%s226 + $0xa] sm:$0xff]
        %v658 = vld [vmem:[%s226 + $0x1a] sm:$0xff]
        %v659 = vld [vmem:[%s226 + $0x22] sm:$0xff]
        %v660 = vld [vmem:[%s226 + $0x32] sm:$0xff]
        %v661 = vld [vmem:[%s226 + $0x3a] sm:$0xff]
        %v662 = vld [vmem:[%s226 + $0x4a] sm:$0xff]
        %v663 = vld [vmem:[%s226 + $0x52] sm:$0xff]
        %v664 = vld [vmem:[%s226 + $0x62] sm:$0xff]
        %v665 = vld [vmem:[%s226 + $0x6a] sm:$0xff]
        %v666 = vld [vmem:[%s226 + $0x7a] sm:$0xff]
        %v667 = vld [vmem:[%s226 + $0x82] sm:$0xff]
        %v668 = vld [vmem:[%s226 + $0x92] sm:$0xff]
        %v669 = vld [vmem:[%s226 + $0x9a] sm:$0xff]
        %v670 = vld [vmem:[%s226 + $0xaa] sm:$0xff]
        %v671 = vld [vmem:[%s226 + $0xb2] sm:$0xff]
        %s672 = scalar_lea.vmem %s219, 8
        %v673 = vld [vmem:[%s672] sm:$0xf]
        %v675 = vsel %vm262, %v656, 0
        %v678 = vsel %vm262, %v657, 0
        %v681 = vsel %vm262, %v658, 0
        %v684 = vsel %vm262, %v659, 0
        %v687 = vsel %vm262, %v660, 0
        %v690 = vsel %vm262, %v661, 0
        %v693 = vsel %vm262, %v662, 0
        %v696 = vsel %vm262, %v663, 0
        %v699 = vsel %vm262, %v664, 0
        %v702 = vsel %vm262, %v665, 0
        %v705 = vsel %vm262, %v666, 0
        %v708 = vsel %vm262, %v667, 0
        %v711 = vsel %vm262, %v668, 0
        %v714 = vsel %vm262, %v669, 0
        %v717 = vsel %vm262, %v670, 0
        %v720 = vsel %vm262, %v671, 0
        %v723 = vsel %vm311, %v673, 0
        %725 = vmatprep.subr.mxu0 0.0
        %726 = vmatpush1.msra.mxu0 0.0
        %727 = vmatprep.subr.mxu0 0.0
        %728 = vmatpush1.msra.mxu0 0.0
        %729 = vmatprep.subr.mxu0 0.0
        %730 = vmatpush1.msra.mxu0 0.0
        %731 = vmatprep.subr.mxu0 0.0
        %732 = vmatpush1.msra.mxu0 0.0
        %733 = vmatprep.subr.mxu0 0.0
        %734 = vmatpush1.msra.mxu0 0.0
        %735 = vmatprep.subr.mxu0 0.0
        %736 = vmatpush1.msra.mxu0 0.0
        %737 = vmatprep.subr.mxu0 0.0
        %738 = vmatpush1.msra.mxu0 0.0
        %739 = vmatprep.subr.mxu0 0.0
        %740 = vmatpush1.msra.mxu0 0.0
        %741 = vmatprep.subr.mxu0 0.0
        %742 = vmatpush1.msra.mxu0 0.0
        %743 = vmatprep.subr.mxu0 0.0
        %744 = vmatpush1.msra.mxu0 0.0
        %745 = vmatprep.subr.mxu0 0.0
        %746 = vmatpush1.msra.mxu0 0.0
        %747 = vmatprep.subr.mxu0 0.0
        %748 = vmatpush1.msra.mxu0 0.0
        %749 = vmatprep.subr.mxu0 0.0
        %750 = vmatpush1.msra.mxu0 0.0
        %751 = vmatprep.subr.mxu0 0.0
        %752 = vmatpush1.msra.mxu0 0.0
        %753 = vmatprep.subr.mxu0 0.0
        %754 = vmatpush1.msra.mxu0 0.0
        %755 = vmatprep.subr.mxu0 0.0
        %756 = vmatpush1.msra.mxu0 %v723
        %757 = vmatprep.subr.mxu0 0.0
        %758 = vmatpush2.msra.mxu0 0.0
        %759 = vmatprep.subr.mxu0 0.0
        %760 = vmatpush2.msra.mxu0 0.0
        %761 = vmatprep.subr.mxu0 0.0
        %762 = vmatpush2.msra.mxu0 0.0
        %763 = vmatprep.subr.mxu0 0.0
        %764 = vmatpush2.msra.mxu0 0.0
        %765 = vmatprep.subr.mxu0 0.0
        %766 = vmatpush2.msra.mxu0 0.0
        %767 = vmatprep.subr.mxu0 0.0
        %768 = vmatpush2.msra.mxu0 0.0
        %769 = vmatprep.subr.mxu0 0.0
        %770 = vmatpush2.msra.mxu0 0.0
        %771 = vmatprep.subr.mxu0 0.0
        %772 = vmatpush2.msra.mxu0 0.0
        %773 = vmatprep.subr.mxu0 0.0
        %774 = vmatpush2.msra.mxu0 0.0
        %775 = vmatprep.subr.mxu0 0.0
        %776 = vmatpush2.msra.mxu0 0.0
        %777 = vmatprep.subr.mxu0 0.0
        %778 = vmatpush2.msra.mxu0 0.0
        %779 = vmatprep.subr.mxu0 0.0
        %780 = vmatpush2.msra.mxu0 0.0
        %781 = vmatprep.subr.mxu0 0.0
        %782 = vmatpush2.msra.mxu0 0.0
        %783 = vmatprep.subr.mxu0 0.0
        %784 = vmatpush2.msra.mxu0 0.0
        %785 = vmatprep.subr.mxu0 0.0
        %786 = vmatpush2.msra.mxu0 0.0
        %787 = vmatprep.subr.mxu0 0.0
        %788 = vmatpush2.msra.mxu0 0.0
        %789 = vmatprep.mubr.f32.mxu0 0.0
        %790 = vmatmul.mubr.f32.gmra.mxu0 %v675
        %v791 = vpop.f32.mrf.mxu0
        %v792 = vadd.f32 0.0, %v791
        %v793 = vpop.f32.mrf.mxu0
        %794 = vmatprep.mubr.f32.mxu0 0.0
        %795 = vmatmul.mubr.f32.gmra.mxu0 %v678
        %v796 = vpop.f32.mrf.mxu0
        %v797 = vadd.f32 0.0, %v796
        %v798 = vpop.f32.mrf.mxu0
        %799 = vmatprep.mubr.f32.mxu0 0.0
        %800 = vmatmul.mubr.f32.gmra.mxu0 %v681
        %v801 = vpop.f32.mrf.mxu0
        %v802 = vadd.f32 0.0, %v801
        %v803 = vpop.f32.mrf.mxu0
        %804 = vmatprep.mubr.f32.mxu0 0.0
        %805 = vmatmul.mubr.f32.gmra.mxu0 %v684
        %v806 = vpop.f32.mrf.mxu0
        %v807 = vadd.f32 0.0, %v806
        %v808 = vpop.f32.mrf.mxu0
        %809 = vmatprep.mubr.f32.mxu0 0.0
        %810 = vmatmul.mubr.f32.gmra.mxu0 %v687
        %v811 = vpop.f32.mrf.mxu0
        %v812 = vadd.f32 0.0, %v811
        %v813 = vpop.f32.mrf.mxu0
        %814 = vmatprep.mubr.f32.mxu0 0.0
        %815 = vmatmul.mubr.f32.gmra.mxu0 %v690
        %v816 = vpop.f32.mrf.mxu0
        %v817 = vadd.f32 0.0, %v816
        %v818 = vpop.f32.mrf.mxu0
        %819 = vmatprep.mubr.f32.mxu0 0.0
        %820 = vmatmul.mubr.f32.gmra.mxu0 %v693
        %v821 = vpop.f32.mrf.mxu0
        %v822 = vadd.f32 0.0, %v821
        %v823 = vpop.f32.mrf.mxu0
        %824 = vmatprep.mubr.f32.mxu0 0.0
        %825 = vmatmul.mubr.f32.gmra.mxu0 %v696
        %v826 = vpop.f32.mrf.mxu0
        %v827 = vadd.f32 0.0, %v826
        %v828 = vpop.f32.mrf.mxu0
        %829 = vmatprep.mubr.f32.mxu0 0.0
        %830 = vmatmul.mubr.f32.gmra.mxu0 %v699
        %v831 = vpop.f32.mrf.mxu0
        %v832 = vadd.f32 0.0, %v831
        %v833 = vpop.f32.mrf.mxu0
        %834 = vmatprep.mubr.f32.mxu0 0.0
        %835 = vmatmul.mubr.f32.gmra.mxu0 %v702
        %v836 = vpop.f32.mrf.mxu0
        %v837 = vadd.f32 0.0, %v836
        %v838 = vpop.f32.mrf.mxu0
        %839 = vmatprep.mubr.f32.mxu0 0.0
        %840 = vmatmul.mubr.f32.gmra.mxu0 %v705
        %v841 = vpop.f32.mrf.mxu0
        %v842 = vadd.f32 0.0, %v841
        %v843 = vpop.f32.mrf.mxu0
        %844 = vmatprep.mubr.f32.mxu0 0.0
        %845 = vmatmul.mubr.f32.gmra.mxu0 %v708
        %v846 = vpop.f32.mrf.mxu0
        %v847 = vadd.f32 0.0, %v846
        %v848 = vpop.f32.mrf.mxu0
        %849 = vmatprep.mubr.f32.mxu0 0.0
        %850 = vmatmul.mubr.f32.gmra.mxu0 %v711
        %v851 = vpop.f32.mrf.mxu0
        %v852 = vadd.f32 0.0, %v851
        %v853 = vpop.f32.mrf.mxu0
        %854 = vmatprep.mubr.f32.mxu0 0.0
        %855 = vmatmul.mubr.f32.gmra.mxu0 %v714
        %v856 = vpop.f32.mrf.mxu0
        %v857 = vadd.f32 0.0, %v856
        %v858 = vpop.f32.mrf.mxu0
        %859 = vmatprep.mubr.f32.mxu0 0.0
        %860 = vmatmul.mubr.f32.gmra.mxu0 %v717
        %v861 = vpop.f32.mrf.mxu0
        %v862 = vadd.f32 0.0, %v861
        %v863 = vpop.f32.mrf.mxu0
        %864 = vmatprep.mubr.f32.mxu0 0.0
        %865 = vmatmul.mubr.f32.gmra.mxu0 %v720
        %v866 = vpop.f32.mrf.mxu0
        %v867 = vadd.f32 0.0, %v866
        %v868 = vpop.f32.mrf.mxu0
        %869 = vdwg.mxu0
        %v870 = vadd.f32 %v578, %v792
        %v871 = vadd.f32 %v583, %v797
        %v872 = vadd.f32 %v588, %v802
        %v873 = vadd.f32 %v593, %v807
        %v874 = vadd.f32 %v598, %v812
        %v875 = vadd.f32 %v603, %v817
        %v876 = vadd.f32 %v608, %v822
        %v877 = vadd.f32 %v613, %v827
        %v878 = vadd.f32 %v618, %v832
        %v879 = vadd.f32 %v623, %v837
        %v880 = vadd.f32 %v628, %v842
        %v881 = vadd.f32 %v633, %v847
        %v882 = vadd.f32 %v638, %v852
        %v883 = vadd.f32 %v643, %v857
        %v884 = vadd.f32 %v648, %v862
        %v885 = vadd.f32 %v653, %v867
        %s886 = sadd.s32 %s224, 1
        %s887 = smul.u32 %s886, 24
        %s888 = scalar_lea.vmem %s215, %s887
        %v889 = vld [vmem:[%s888] sm:$0xff]
        %v890 = vld [vmem:[%s888 + $0x8] sm:$0xff]
        %v891 = vld [vmem:[%s888 + $0x18] sm:$0xff]
        %v892 = vld [vmem:[%s888 + $0x20] sm:$0xff]
        %v893 = vld [vmem:[%s888 + $0x30] sm:$0xff]
        %v894 = vld [vmem:[%s888 + $0x38] sm:$0xff]
        %v895 = vld [vmem:[%s888 + $0x48] sm:$0xff]
        %v896 = vld [vmem:[%s888 + $0x50] sm:$0xff]
        %v897 = vld [vmem:[%s888 + $0x60] sm:$0xff]
        %v898 = vld [vmem:[%s888 + $0x68] sm:$0xff]
        %v899 = vld [vmem:[%s888 + $0x78] sm:$0xff]
        %v900 = vld [vmem:[%s888 + $0x80] sm:$0xff]
        %v901 = vld [vmem:[%s888 + $0x90] sm:$0xff]
        %v902 = vld [vmem:[%s888 + $0x98] sm:$0xff]
        %v903 = vld [vmem:[%s888 + $0xa8] sm:$0xff]
        %v904 = vld [vmem:[%s888 + $0xb0] sm:$0xff]
        %s905 = scalar_lea.vmem %s219, 12
        %v906 = vld [vmem:[%s905] sm:$0xf]
        %v908 = vsel %vm262, %v889, 0
        %v911 = vsel %vm262, %v890, 0
        %v914 = vsel %vm262, %v891, 0
        %v917 = vsel %vm262, %v892, 0
        %v920 = vsel %vm262, %v893, 0
        %v923 = vsel %vm262, %v894, 0
        %v926 = vsel %vm262, %v895, 0
        %v929 = vsel %vm262, %v896, 0
        %v932 = vsel %vm262, %v897, 0
        %v935 = vsel %vm262, %v898, 0
        %v938 = vsel %vm262, %v899, 0
        %v941 = vsel %vm262, %v900, 0
        %v944 = vsel %vm262, %v901, 0
        %v947 = vsel %vm262, %v902, 0
        %v950 = vsel %vm262, %v903, 0
        %v953 = vsel %vm262, %v904, 0
        %v956 = vsel %vm311, %v906, 0
        %958 = vmatprep.subr.mxu0 0.0
        %959 = vmatpush1.msra.mxu0 0.0
        %960 = vmatprep.subr.mxu0 0.0
        %961 = vmatpush1.msra.mxu0 0.0
        %962 = vmatprep.subr.mxu0 0.0
        %963 = vmatpush1.msra.mxu0 0.0
        %964 = vmatprep.subr.mxu0 0.0
        %965 = vmatpush1.msra.mxu0 0.0
        %966 = vmatprep.subr.mxu0 0.0
        %967 = vmatpush1.msra.mxu0 0.0
        %968 = vmatprep.subr.mxu0 0.0
        %969 = vmatpush1.msra.mxu0 0.0
        %970 = vmatprep.subr.mxu0 0.0
        %971 = vmatpush1.msra.mxu0 0.0
        %972 = vmatprep.subr.mxu0 0.0
        %973 = vmatpush1.msra.mxu0 0.0
        %974 = vmatprep.subr.mxu0 0.0
        %975 = vmatpush1.msra.mxu0 0.0
        %976 = vmatprep.subr.mxu0 0.0
        %977 = vmatpush1.msra.mxu0 0.0
        %978 = vmatprep.subr.mxu0 0.0
        %979 = vmatpush1.msra.mxu0 0.0
        %980 = vmatprep.subr.mxu0 0.0
        %981 = vmatpush1.msra.mxu0 0.0
        %982 = vmatprep.subr.mxu0 0.0
        %983 = vmatpush1.msra.mxu0 0.0
        %984 = vmatprep.subr.mxu0 0.0
        %985 = vmatpush1.msra.mxu0 0.0
        %986 = vmatprep.subr.mxu0 0.0
        %987 = vmatpush1.msra.mxu0 0.0
        %988 = vmatprep.subr.mxu0 0.0
        %989 = vmatpush1.msra.mxu0 %v956
        %990 = vmatprep.subr.mxu0 0.0
        %991 = vmatpush2.msra.mxu0 0.0
        %992 = vmatprep.subr.mxu0 0.0
        %993 = vmatpush2.msra.mxu0 0.0
        %994 = vmatprep.subr.mxu0 0.0
        %995 = vmatpush2.msra.mxu0 0.0
        %996 = vmatprep.subr.mxu0 0.0
        %997 = vmatpush2.msra.mxu0 0.0
        %998 = vmatprep.subr.mxu0 0.0
        %999 = vmatpush2.msra.mxu0 0.0
        %1000 = vmatprep.subr.mxu0 0.0
        %1001 = vmatpush2.msra.mxu0 0.0
        %1002 = vmatprep.subr.mxu0 0.0
        %1003 = vmatpush2.msra.mxu0 0.0
        %1004 = vmatprep.subr.mxu0 0.0
        %1005 = vmatpush2.msra.mxu0 0.0
        %1006 = vmatprep.subr.mxu0 0.0
        %1007 = vmatpush2.msra.mxu0 0.0
        %1008 = vmatprep.subr.mxu0 0.0
        %1009 = vmatpush2.msra.mxu0 0.0
        %1010 = vmatprep.subr.mxu0 0.0
        %1011 = vmatpush2.msra.mxu0 0.0
        %1012 = vmatprep.subr.mxu0 0.0
        %1013 = vmatpush2.msra.mxu0 0.0
        %1014 = vmatprep.subr.mxu0 0.0
        %1015 = vmatpush2.msra.mxu0 0.0
        %1016 = vmatprep.subr.mxu0 0.0
        %1017 = vmatpush2.msra.mxu0 0.0
        %1018 = vmatprep.subr.mxu0 0.0
        %1019 = vmatpush2.msra.mxu0 0.0
        %1020 = vmatprep.subr.mxu0 0.0
        %1021 = vmatpush2.msra.mxu0 0.0
        %1022 = vmatprep.mubr.f32.mxu0 0.0
        %1023 = vmatmul.mubr.f32.gmra.mxu0 %v908
        %v1024 = vpop.f32.mrf.mxu0
        %v1025 = vadd.f32 0.0, %v1024
        %v1026 = vpop.f32.mrf.mxu0
        %1027 = vmatprep.mubr.f32.mxu0 0.0
        %1028 = vmatmul.mubr.f32.gmra.mxu0 %v911
        %v1029 = vpop.f32.mrf.mxu0
        %v1030 = vadd.f32 0.0, %v1029
        %v1031 = vpop.f32.mrf.mxu0
        %1032 = vmatprep.mubr.f32.mxu0 0.0
        %1033 = vmatmul.mubr.f32.gmra.mxu0 %v914
        %v1034 = vpop.f32.mrf.mxu0
        %v1035 = vadd.f32 0.0, %v1034
        %v1036 = vpop.f32.mrf.mxu0
        %1037 = vmatprep.mubr.f32.mxu0 0.0
        %1038 = vmatmul.mubr.f32.gmra.mxu0 %v917
        %v1039 = vpop.f32.mrf.mxu0
        %v1040 = vadd.f32 0.0, %v1039
        %v1041 = vpop.f32.mrf.mxu0
        %1042 = vmatprep.mubr.f32.mxu0 0.0
        %1043 = vmatmul.mubr.f32.gmra.mxu0 %v920
        %v1044 = vpop.f32.mrf.mxu0
        %v1045 = vadd.f32 0.0, %v1044
        %v1046 = vpop.f32.mrf.mxu0
        %1047 = vmatprep.mubr.f32.mxu0 0.0
        %1048 = vmatmul.mubr.f32.gmra.mxu0 %v923
        %v1049 = vpop.f32.mrf.mxu0
        %v1050 = vadd.f32 0.0, %v1049
        %v1051 = vpop.f32.mrf.mxu0
        %1052 = vmatprep.mubr.f32.mxu0 0.0
        %1053 = vmatmul.mubr.f32.gmra.mxu0 %v926
        %v1054 = vpop.f32.mrf.mxu0
        %v1055 = vadd.f32 0.0, %v1054
        %v1056 = vpop.f32.mrf.mxu0
        %1057 = vmatprep.mubr.f32.mxu0 0.0
        %1058 = vmatmul.mubr.f32.gmra.mxu0 %v929
        %v1059 = vpop.f32.mrf.mxu0
        %v1060 = vadd.f32 0.0, %v1059
        %v1061 = vpop.f32.mrf.mxu0
        %1062 = vmatprep.mubr.f32.mxu0 0.0
        %1063 = vmatmul.mubr.f32.gmra.mxu0 %v932
        %v1064 = vpop.f32.mrf.mxu0
        %v1065 = vadd.f32 0.0, %v1064
        %v1066 = vpop.f32.mrf.mxu0
        %1067 = vmatprep.mubr.f32.mxu0 0.0
        %1068 = vmatmul.mubr.f32.gmra.mxu0 %v935
        %v1069 = vpop.f32.mrf.mxu0
        %v1070 = vadd.f32 0.0, %v1069
        %v1071 = vpop.f32.mrf.mxu0
        %1072 = vmatprep.mubr.f32.mxu0 0.0
        %1073 = vmatmul.mubr.f32.gmra.mxu0 %v938
        %v1074 = vpop.f32.mrf.mxu0
        %v1075 = vadd.f32 0.0, %v1074
        %v1076 = vpop.f32.mrf.mxu0
        %1077 = vmatprep.mubr.f32.mxu0 0.0
        %1078 = vmatmul.mubr.f32.gmra.mxu0 %v941
        %v1079 = vpop.f32.mrf.mxu0
        %v1080 = vadd.f32 0.0, %v1079
        %v1081 = vpop.f32.mrf.mxu0
        %1082 = vmatprep.mubr.f32.mxu0 0.0
        %1083 = vmatmul.mubr.f32.gmra.mxu0 %v944
        %v1084 = vpop.f32.mrf.mxu0
        %v1085 = vadd.f32 0.0, %v1084
        %v1086 = vpop.f32.mrf.mxu0
        %1087 = vmatprep.mubr.f32.mxu0 0.0
        %1088 = vmatmul.mubr.f32.gmra.mxu0 %v947
        %v1089 = vpop.f32.mrf.mxu0
        %v1090 = vadd.f32 0.0, %v1089
        %v1091 = vpop.f32.mrf.mxu0
        %1092 = vmatprep.mubr.f32.mxu0 0.0
        %1093 = vmatmul.mubr.f32.gmra.mxu0 %v950
        %v1094 = vpop.f32.mrf.mxu0
        %v1095 = vadd.f32 0.0, %v1094
        %v1096 = vpop.f32.mrf.mxu0
        %1097 = vmatprep.mubr.f32.mxu0 0.0
        %1098 = vmatmul.mubr.f32.gmra.mxu0 %v953
        %v1099 = vpop.f32.mrf.mxu0
        %v1100 = vadd.f32 0.0, %v1099
        %v1101 = vpop.f32.mrf.mxu0
        %1102 = vdwg.mxu0
        %v1103 = vadd.f32 %v870, %v1025
        %v1104 = vadd.f32 %v871, %v1030
        %v1105 = vadd.f32 %v872, %v1035
        %v1106 = vadd.f32 %v873, %v1040
        %v1107 = vadd.f32 %v874, %v1045
        %v1108 = vadd.f32 %v875, %v1050
        %v1109 = vadd.f32 %v876, %v1055
        %v1110 = vadd.f32 %v877, %v1060
        %v1111 = vadd.f32 %v878, %v1065
        %v1112 = vadd.f32 %v879, %v1070
        %v1113 = vadd.f32 %v880, %v1075
        %v1114 = vadd.f32 %v881, %v1080
        %v1115 = vadd.f32 %v882, %v1085
        %v1116 = vadd.f32 %v883, %v1090
        %v1117 = vadd.f32 %v884, %v1095
        %v1118 = vadd.f32 %v885, %v1100
        %v1119 = vld [vmem:[%s888 + $0x1] sm:$0xff]
        %v1120 = vld [vmem:[%s888 + $0x9] sm:$0xff]
        %v1121 = vld [vmem:[%s888 + $0x19] sm:$0xff]
        %v1122 = vld [vmem:[%s888 + $0x21] sm:$0xff]
        %v1123 = vld [vmem:[%s888 + $0x31] sm:$0xff]
        %v1124 = vld [vmem:[%s888 + $0x39] sm:$0xff]
        %v1125 = vld [vmem:[%s888 + $0x49] sm:$0xff]
        %v1126 = vld [vmem:[%s888 + $0x51] sm:$0xff]
        %v1127 = vld [vmem:[%s888 + $0x61] sm:$0xff]
        %v1128 = vld [vmem:[%s888 + $0x69] sm:$0xff]
        %v1129 = vld [vmem:[%s888 + $0x79] sm:$0xff]
        %v1130 = vld [vmem:[%s888 + $0x81] sm:$0xff]
        %v1131 = vld [vmem:[%s888 + $0x91] sm:$0xff]
        %v1132 = vld [vmem:[%s888 + $0x99] sm:$0xff]
        %v1133 = vld [vmem:[%s888 + $0xa9] sm:$0xff]
        %v1134 = vld [vmem:[%s888 + $0xb1] sm:$0xff]
        %s1135 = scalar_lea.vmem %s219, 16
        %v1136 = vld [vmem:[%s1135] sm:$0xf]
        %v1138 = vsel %vm262, %v1119, 0
        %v1141 = vsel %vm262, %v1120, 0
        %v1144 = vsel %vm262, %v1121, 0
        %v1147 = vsel %vm262, %v1122, 0
        %v1150 = vsel %vm262, %v1123, 0
        %v1153 = vsel %vm262, %v1124, 0
        %v1156 = vsel %vm262, %v1125, 0
        %v1159 = vsel %vm262, %v1126, 0
        %v1162 = vsel %vm262, %v1127, 0
        %v1165 = vsel %vm262, %v1128, 0
        %v1168 = vsel %vm262, %v1129, 0
        %v1171 = vsel %vm262, %v1130, 0
        %v1174 = vsel %vm262, %v1131, 0
        %v1177 = vsel %vm262, %v1132, 0
        %v1180 = vsel %vm262, %v1133, 0
        %v1183 = vsel %vm262, %v1134, 0
        %v1186 = vsel %vm311, %v1136, 0
        %1188 = vmatprep.subr.mxu0 0.0
        %1189 = vmatpush1.msra.mxu0 0.0
        %1190 = vmatprep.subr.mxu0 0.0
        %1191 = vmatpush1.msra.mxu0 0.0
        %1192 = vmatprep.subr.mxu0 0.0
        %1193 = vmatpush1.msra.mxu0 0.0
        %1194 = vmatprep.subr.mxu0 0.0
        %1195 = vmatpush1.msra.mxu0 0.0
        %1196 = vmatprep.subr.mxu0 0.0
        %1197 = vmatpush1.msra.mxu0 0.0
        %1198 = vmatprep.subr.mxu0 0.0
        %1199 = vmatpush1.msra.mxu0 0.0
        %1200 = vmatprep.subr.mxu0 0.0
        %1201 = vmatpush1.msra.mxu0 0.0
        %1202 = vmatprep.subr.mxu0 0.0
        %1203 = vmatpush1.msra.mxu0 0.0
        %1204 = vmatprep.subr.mxu0 0.0
        %1205 = vmatpush1.msra.mxu0 0.0
        %1206 = vmatprep.subr.mxu0 0.0
        %1207 = vmatpush1.msra.mxu0 0.0
        %1208 = vmatprep.subr.mxu0 0.0
        %1209 = vmatpush1.msra.mxu0 0.0
        %1210 = vmatprep.subr.mxu0 0.0
        %1211 = vmatpush1.msra.mxu0 0.0
        %1212 = vmatprep.subr.mxu0 0.0
        %1213 = vmatpush1.msra.mxu0 0.0
        %1214 = vmatprep.subr.mxu0 0.0
        %1215 = vmatpush1.msra.mxu0 0.0
        %1216 = vmatprep.subr.mxu0 0.0
        %1217 = vmatpush1.msra.mxu0 0.0
        %1218 = vmatprep.subr.mxu0 0.0
        %1219 = vmatpush1.msra.mxu0 %v1186
        %1220 = vmatprep.subr.mxu0 0.0
        %1221 = vmatpush2.msra.mxu0 0.0
        %1222 = vmatprep.subr.mxu0 0.0
        %1223 = vmatpush2.msra.mxu0 0.0
        %1224 = vmatprep.subr.mxu0 0.0
        %1225 = vmatpush2.msra.mxu0 0.0
        %1226 = vmatprep.subr.mxu0 0.0
        %1227 = vmatpush2.msra.mxu0 0.0
        %1228 = vmatprep.subr.mxu0 0.0
        %1229 = vmatpush2.msra.mxu0 0.0
        %1230 = vmatprep.subr.mxu0 0.0
        %1231 = vmatpush2.msra.mxu0 0.0
        %1232 = vmatprep.subr.mxu0 0.0
        %1233 = vmatpush2.msra.mxu0 0.0
        %1234 = vmatprep.subr.mxu0 0.0
        %1235 = vmatpush2.msra.mxu0 0.0
        %1236 = vmatprep.subr.mxu0 0.0
        %1237 = vmatpush2.msra.mxu0 0.0
        %1238 = vmatprep.subr.mxu0 0.0
        %1239 = vmatpush2.msra.mxu0 0.0
        %1240 = vmatprep.subr.mxu0 0.0
        %1241 = vmatpush2.msra.mxu0 0.0
        %1242 = vmatprep.subr.mxu0 0.0
        %1243 = vmatpush2.msra.mxu0 0.0
        %1244 = vmatprep.subr.mxu0 0.0
        %1245 = vmatpush2.msra.mxu0 0.0
        %1246 = vmatprep.subr.mxu0 0.0
        %1247 = vmatpush2.msra.mxu0 0.0
        %1248 = vmatprep.subr.mxu0 0.0
        %1249 = vmatpush2.msra.mxu0 0.0
        %1250 = vmatprep.subr.mxu0 0.0
        %1251 = vmatpush2.msra.mxu0 0.0
        %1252 = vmatprep.mubr.f32.mxu0 0.0
        %1253 = vmatmul.mubr.f32.gmra.mxu0 %v1138
        %v1254 = vpop.f32.mrf.mxu0
        %v1255 = vadd.f32 0.0, %v1254
        %v1256 = vpop.f32.mrf.mxu0
        %1257 = vmatprep.mubr.f32.mxu0 0.0
        %1258 = vmatmul.mubr.f32.gmra.mxu0 %v1141
        %v1259 = vpop.f32.mrf.mxu0
        %v1260 = vadd.f32 0.0, %v1259
        %v1261 = vpop.f32.mrf.mxu0
        %1262 = vmatprep.mubr.f32.mxu0 0.0
        %1263 = vmatmul.mubr.f32.gmra.mxu0 %v1144
        %v1264 = vpop.f32.mrf.mxu0
        %v1265 = vadd.f32 0.0, %v1264
        %v1266 = vpop.f32.mrf.mxu0
        %1267 = vmatprep.mubr.f32.mxu0 0.0
        %1268 = vmatmul.mubr.f32.gmra.mxu0 %v1147
        %v1269 = vpop.f32.mrf.mxu0
        %v1270 = vadd.f32 0.0, %v1269
        %v1271 = vpop.f32.mrf.mxu0
        %1272 = vmatprep.mubr.f32.mxu0 0.0
        %1273 = vmatmul.mubr.f32.gmra.mxu0 %v1150
        %v1274 = vpop.f32.mrf.mxu0
        %v1275 = vadd.f32 0.0, %v1274
        %v1276 = vpop.f32.mrf.mxu0
        %1277 = vmatprep.mubr.f32.mxu0 0.0
        %1278 = vmatmul.mubr.f32.gmra.mxu0 %v1153
        %v1279 = vpop.f32.mrf.mxu0
        %v1280 = vadd.f32 0.0, %v1279
        %v1281 = vpop.f32.mrf.mxu0
        %1282 = vmatprep.mubr.f32.mxu0 0.0
        %1283 = vmatmul.mubr.f32.gmra.mxu0 %v1156
        %v1284 = vpop.f32.mrf.mxu0
        %v1285 = vadd.f32 0.0, %v1284
        %v1286 = vpop.f32.mrf.mxu0
        %1287 = vmatprep.mubr.f32.mxu0 0.0
        %1288 = vmatmul.mubr.f32.gmra.mxu0 %v1159
        %v1289 = vpop.f32.mrf.mxu0
        %v1290 = vadd.f32 0.0, %v1289
        %v1291 = vpop.f32.mrf.mxu0
        %1292 = vmatprep.mubr.f32.mxu0 0.0
        %1293 = vmatmul.mubr.f32.gmra.mxu0 %v1162
        %v1294 = vpop.f32.mrf.mxu0
        %v1295 = vadd.f32 0.0, %v1294
        %v1296 = vpop.f32.mrf.mxu0
        %1297 = vmatprep.mubr.f32.mxu0 0.0
        %1298 = vmatmul.mubr.f32.gmra.mxu0 %v1165
        %v1299 = vpop.f32.mrf.mxu0
        %v1300 = vadd.f32 0.0, %v1299
        %v1301 = vpop.f32.mrf.mxu0
        %1302 = vmatprep.mubr.f32.mxu0 0.0
        %1303 = vmatmul.mubr.f32.gmra.mxu0 %v1168
        %v1304 = vpop.f32.mrf.mxu0
        %v1305 = vadd.f32 0.0, %v1304
        %v1306 = vpop.f32.mrf.mxu0
        %1307 = vmatprep.mubr.f32.mxu0 0.0
        %1308 = vmatmul.mubr.f32.gmra.mxu0 %v1171
        %v1309 = vpop.f32.mrf.mxu0
        %v1310 = vadd.f32 0.0, %v1309
        %v1311 = vpop.f32.mrf.mxu0
        %1312 = vmatprep.mubr.f32.mxu0 0.0
        %1313 = vmatmul.mubr.f32.gmra.mxu0 %v1174
        %v1314 = vpop.f32.mrf.mxu0
        %v1315 = vadd.f32 0.0, %v1314
        %v1316 = vpop.f32.mrf.mxu0
        %1317 = vmatprep.mubr.f32.mxu0 0.0
        %1318 = vmatmul.mubr.f32.gmra.mxu0 %v1177
        %v1319 = vpop.f32.mrf.mxu0
        %v1320 = vadd.f32 0.0, %v1319
        %v1321 = vpop.f32.mrf.mxu0
        %1322 = vmatprep.mubr.f32.mxu0 0.0
        %1323 = vmatmul.mubr.f32.gmra.mxu0 %v1180
        %v1324 = vpop.f32.mrf.mxu0
        %v1325 = vadd.f32 0.0, %v1324
        %v1326 = vpop.f32.mrf.mxu0
        %1327 = vmatprep.mubr.f32.mxu0 0.0
        %1328 = vmatmul.mubr.f32.gmra.mxu0 %v1183
        %v1329 = vpop.f32.mrf.mxu0
        %v1330 = vadd.f32 0.0, %v1329
        %v1331 = vpop.f32.mrf.mxu0
        %1332 = vdwg.mxu0
        %v1333 = vadd.f32 %v1103, %v1255
        %v1334 = vadd.f32 %v1104, %v1260
        %v1335 = vadd.f32 %v1105, %v1265
        %v1336 = vadd.f32 %v1106, %v1270
        %v1337 = vadd.f32 %v1107, %v1275
        %v1338 = vadd.f32 %v1108, %v1280
        %v1339 = vadd.f32 %v1109, %v1285
        %v1340 = vadd.f32 %v1110, %v1290
        %v1341 = vadd.f32 %v1111, %v1295
        %v1342 = vadd.f32 %v1112, %v1300
        %v1343 = vadd.f32 %v1113, %v1305
        %v1344 = vadd.f32 %v1114, %v1310
        %v1345 = vadd.f32 %v1115, %v1315
        %v1346 = vadd.f32 %v1116, %v1320
        %v1347 = vadd.f32 %v1117, %v1325
        %v1348 = vadd.f32 %v1118, %v1330
        %v1349 = vld [vmem:[%s888 + $0x2] sm:$0xff]
        %v1350 = vld [vmem:[%s888 + $0xa] sm:$0xff]
        %v1351 = vld [vmem:[%s888 + $0x1a] sm:$0xff]
        %v1352 = vld [vmem:[%s888 + $0x22] sm:$0xff]
        %v1353 = vld [vmem:[%s888 + $0x32] sm:$0xff]
        %v1354 = vld [vmem:[%s888 + $0x3a] sm:$0xff]
        %v1355 = vld [vmem:[%s888 + $0x4a] sm:$0xff]
        %v1356 = vld [vmem:[%s888 + $0x52] sm:$0xff]
        %v1357 = vld [vmem:[%s888 + $0x62] sm:$0xff]
        %v1358 = vld [vmem:[%s888 + $0x6a] sm:$0xff]
        %v1359 = vld [vmem:[%s888 + $0x7a] sm:$0xff]
        %v1360 = vld [vmem:[%s888 + $0x82] sm:$0xff]
        %v1361 = vld [vmem:[%s888 + $0x92] sm:$0xff]
        %v1362 = vld [vmem:[%s888 + $0x9a] sm:$0xff]
        %v1363 = vld [vmem:[%s888 + $0xaa] sm:$0xff]
        %v1364 = vld [vmem:[%s888 + $0xb2] sm:$0xff]
        %s1365 = scalar_lea.vmem %s219, 20
        %v1366 = vld [vmem:[%s1365] sm:$0xf]
        %v1368 = vsel %vm262, %v1349, 0
        %v1371 = vsel %vm262, %v1350, 0
        %v1374 = vsel %vm262, %v1351, 0
        %v1377 = vsel %vm262, %v1352, 0
        %v1380 = vsel %vm262, %v1353, 0
        %v1383 = vsel %vm262, %v1354, 0
        %v1386 = vsel %vm262, %v1355, 0
        %v1389 = vsel %vm262, %v1356, 0
        %v1392 = vsel %vm262, %v1357, 0
        %v1395 = vsel %vm262, %v1358, 0
        %v1398 = vsel %vm262, %v1359, 0
        %v1401 = vsel %vm262, %v1360, 0
        %v1404 = vsel %vm262, %v1361, 0
        %v1407 = vsel %vm262, %v1362, 0
        %v1410 = vsel %vm262, %v1363, 0
        %v1413 = vsel %vm262, %v1364, 0
        %v1416 = vsel %vm311, %v1366, 0
        %1418 = vmatprep.subr.mxu0 0.0
        %1419 = vmatpush1.msra.mxu0 0.0
        %1420 = vmatprep.subr.mxu0 0.0
        %1421 = vmatpush1.msra.mxu0 0.0
        %1422 = vmatprep.subr.mxu0 0.0
        %1423 = vmatpush1.msra.mxu0 0.0
        %1424 = vmatprep.subr.mxu0 0.0
        %1425 = vmatpush1.msra.mxu0 0.0
        %1426 = vmatprep.subr.mxu0 0.0
        %1427 = vmatpush1.msra.mxu0 0.0
        %1428 = vmatprep.subr.mxu0 0.0
        %1429 = vmatpush1.msra.mxu0 0.0
        %1430 = vmatprep.subr.mxu0 0.0
        %1431 = vmatpush1.msra.mxu0 0.0
        %1432 = vmatprep.subr.mxu0 0.0
        %1433 = vmatpush1.msra.mxu0 0.0
        %1434 = vmatprep.subr.mxu0 0.0
        %1435 = vmatpush1.msra.mxu0 0.0
        %1436 = vmatprep.subr.mxu0 0.0
        %1437 = vmatpush1.msra.mxu0 0.0
        %1438 = vmatprep.subr.mxu0 0.0
        %1439 = vmatpush1.msra.mxu0 0.0
        %1440 = vmatprep.subr.mxu0 0.0
        %1441 = vmatpush1.msra.mxu0 0.0
        %1442 = vmatprep.subr.mxu0 0.0
        %1443 = vmatpush1.msra.mxu0 0.0
        %1444 = vmatprep.subr.mxu0 0.0
        %1445 = vmatpush1.msra.mxu0 0.0
        %1446 = vmatprep.subr.mxu0 0.0
        %1447 = vmatpush1.msra.mxu0 0.0
        %1448 = vmatprep.subr.mxu0 0.0
        %1449 = vmatpush1.msra.mxu0 %v1416
        %1450 = vmatprep.subr.mxu0 0.0
        %1451 = vmatpush2.msra.mxu0 0.0
        %1452 = vmatprep.subr.mxu0 0.0
        %1453 = vmatpush2.msra.mxu0 0.0
        %1454 = vmatprep.subr.mxu0 0.0
        %1455 = vmatpush2.msra.mxu0 0.0
        %1456 = vmatprep.subr.mxu0 0.0
        %1457 = vmatpush2.msra.mxu0 0.0
        %1458 = vmatprep.subr.mxu0 0.0
        %1459 = vmatpush2.msra.mxu0 0.0
        %1460 = vmatprep.subr.mxu0 0.0
        %1461 = vmatpush2.msra.mxu0 0.0
        %1462 = vmatprep.subr.mxu0 0.0
        %1463 = vmatpush2.msra.mxu0 0.0
        %1464 = vmatprep.subr.mxu0 0.0
        %1465 = vmatpush2.msra.mxu0 0.0
        %1466 = vmatprep.subr.mxu0 0.0
        %1467 = vmatpush2.msra.mxu0 0.0
        %1468 = vmatprep.subr.mxu0 0.0
        %1469 = vmatpush2.msra.mxu0 0.0
        %1470 = vmatprep.subr.mxu0 0.0
        %1471 = vmatpush2.msra.mxu0 0.0
        %1472 = vmatprep.subr.mxu0 0.0
        %1473 = vmatpush2.msra.mxu0 0.0
        %1474 = vmatprep.subr.mxu0 0.0
        %1475 = vmatpush2.msra.mxu0 0.0
        %1476 = vmatprep.subr.mxu0 0.0
        %1477 = vmatpush2.msra.mxu0 0.0
        %1478 = vmatprep.subr.mxu0 0.0
        %1479 = vmatpush2.msra.mxu0 0.0
        %1480 = vmatprep.subr.mxu0 0.0
        %1481 = vmatpush2.msra.mxu0 0.0
        %1482 = vmatprep.mubr.f32.mxu0 0.0
        %1483 = vmatmul.mubr.f32.gmra.mxu0 %v1368
        %v1484 = vpop.f32.mrf.mxu0
        %v1485 = vadd.f32 0.0, %v1484
        %v1486 = vpop.f32.mrf.mxu0
        %1487 = vmatprep.mubr.f32.mxu0 0.0
        %1488 = vmatmul.mubr.f32.gmra.mxu0 %v1371
        %v1489 = vpop.f32.mrf.mxu0
        %v1490 = vadd.f32 0.0, %v1489
        %v1491 = vpop.f32.mrf.mxu0
        %1492 = vmatprep.mubr.f32.mxu0 0.0
        %1493 = vmatmul.mubr.f32.gmra.mxu0 %v1374
        %v1494 = vpop.f32.mrf.mxu0
        %v1495 = vadd.f32 0.0, %v1494
        %v1496 = vpop.f32.mrf.mxu0
        %1497 = vmatprep.mubr.f32.mxu0 0.0
        %1498 = vmatmul.mubr.f32.gmra.mxu0 %v1377
        %v1499 = vpop.f32.mrf.mxu0
        %v1500 = vadd.f32 0.0, %v1499
        %v1501 = vpop.f32.mrf.mxu0
        %1502 = vmatprep.mubr.f32.mxu0 0.0
        %1503 = vmatmul.mubr.f32.gmra.mxu0 %v1380
        %v1504 = vpop.f32.mrf.mxu0
        %v1505 = vadd.f32 0.0, %v1504
        %v1506 = vpop.f32.mrf.mxu0
        %1507 = vmatprep.mubr.f32.mxu0 0.0
        %1508 = vmatmul.mubr.f32.gmra.mxu0 %v1383
        %v1509 = vpop.f32.mrf.mxu0
        %v1510 = vadd.f32 0.0, %v1509
        %v1511 = vpop.f32.mrf.mxu0
        %1512 = vmatprep.mubr.f32.mxu0 0.0
        %1513 = vmatmul.mubr.f32.gmra.mxu0 %v1386
        %v1514 = vpop.f32.mrf.mxu0
        %v1515 = vadd.f32 0.0, %v1514
        %v1516 = vpop.f32.mrf.mxu0
        %1517 = vmatprep.mubr.f32.mxu0 0.0
        %1518 = vmatmul.mubr.f32.gmra.mxu0 %v1389
        %v1519 = vpop.f32.mrf.mxu0
        %v1520 = vadd.f32 0.0, %v1519
        %v1521 = vpop.f32.mrf.mxu0
        %1522 = vmatprep.mubr.f32.mxu0 0.0
        %1523 = vmatmul.mubr.f32.gmra.mxu0 %v1392
        %v1524 = vpop.f32.mrf.mxu0
        %v1525 = vadd.f32 0.0, %v1524
        %v1526 = vpop.f32.mrf.mxu0
        %1527 = vmatprep.mubr.f32.mxu0 0.0
        %1528 = vmatmul.mubr.f32.gmra.mxu0 %v1395
        %v1529 = vpop.f32.mrf.mxu0
        %v1530 = vadd.f32 0.0, %v1529
        %v1531 = vpop.f32.mrf.mxu0
        %1532 = vmatprep.mubr.f32.mxu0 0.0
        %1533 = vmatmul.mubr.f32.gmra.mxu0 %v1398
        %v1534 = vpop.f32.mrf.mxu0
        %v1535 = vadd.f32 0.0, %v1534
        %v1536 = vpop.f32.mrf.mxu0
        %1537 = vmatprep.mubr.f32.mxu0 0.0
        %1538 = vmatmul.mubr.f32.gmra.mxu0 %v1401
        %v1539 = vpop.f32.mrf.mxu0
        %v1540 = vadd.f32 0.0, %v1539
        %v1541 = vpop.f32.mrf.mxu0
        %1542 = vmatprep.mubr.f32.mxu0 0.0
        %1543 = vmatmul.mubr.f32.gmra.mxu0 %v1404
        %v1544 = vpop.f32.mrf.mxu0
        %v1545 = vadd.f32 0.0, %v1544
        %v1546 = vpop.f32.mrf.mxu0
        %1547 = vmatprep.mubr.f32.mxu0 0.0
        %1548 = vmatmul.mubr.f32.gmra.mxu0 %v1407
        %v1549 = vpop.f32.mrf.mxu0
        %v1550 = vadd.f32 0.0, %v1549
        %v1551 = vpop.f32.mrf.mxu0
        %1552 = vmatprep.mubr.f32.mxu0 0.0
        %1553 = vmatmul.mubr.f32.gmra.mxu0 %v1410
        %v1554 = vpop.f32.mrf.mxu0
        %v1555 = vadd.f32 0.0, %v1554
        %v1556 = vpop.f32.mrf.mxu0
        %1557 = vmatprep.mubr.f32.mxu0 0.0
        %1558 = vmatmul.mubr.f32.gmra.mxu0 %v1413
        %v1559 = vpop.f32.mrf.mxu0
        %v1560 = vadd.f32 0.0, %v1559
        %v1561 = vpop.f32.mrf.mxu0
        %1562 = vdwg.mxu0
        %v1563 = vadd.f32 %v1333, %v1485
        %v1564 = vadd.f32 %v1334, %v1490
        %v1565 = vadd.f32 %v1335, %v1495
        %v1566 = vadd.f32 %v1336, %v1500
        %v1567 = vadd.f32 %v1337, %v1505
        %v1568 = vadd.f32 %v1338, %v1510
        %v1569 = vadd.f32 %v1339, %v1515
        %v1570 = vadd.f32 %v1340, %v1520
        %v1571 = vadd.f32 %v1341, %v1525
        %v1572 = vadd.f32 %v1342, %v1530
        %v1573 = vadd.f32 %v1343, %v1535
        %v1574 = vadd.f32 %v1344, %v1540
        %v1575 = vadd.f32 %v1345, %v1545
        %v1576 = vadd.f32 %v1346, %v1550
        %v1577 = vadd.f32 %v1347, %v1555
        %v1578 = vadd.f32 %v1348, %v1560
        %s1579 = sadd.s32 %s224, 2
        %s1580 = smul.u32 %s1579, 24
        %s1581 = scalar_lea.vmem %s215, %s1580
        %v1582 = vld [vmem:[%s1581] sm:$0xff]
        %v1583 = vld [vmem:[%s1581 + $0x8] sm:$0xff]
        %v1584 = vld [vmem:[%s1581 + $0x18] sm:$0xff]
        %v1585 = vld [vmem:[%s1581 + $0x20] sm:$0xff]
        %v1586 = vld [vmem:[%s1581 + $0x30] sm:$0xff]
        %v1587 = vld [vmem:[%s1581 + $0x38] sm:$0xff]
        %v1588 = vld [vmem:[%s1581 + $0x48] sm:$0xff]
        %v1589 = vld [vmem:[%s1581 + $0x50] sm:$0xff]
        %v1590 = vld [vmem:[%s1581 + $0x60] sm:$0xff]
        %v1591 = vld [vmem:[%s1581 + $0x68] sm:$0xff]
        %v1592 = vld [vmem:[%s1581 + $0x78] sm:$0xff]
        %v1593 = vld [vmem:[%s1581 + $0x80] sm:$0xff]
        %v1594 = vld [vmem:[%s1581 + $0x90] sm:$0xff]
        %v1595 = vld [vmem:[%s1581 + $0x98] sm:$0xff]
        %v1596 = vld [vmem:[%s1581 + $0xa8] sm:$0xff]
        %v1597 = vld [vmem:[%s1581 + $0xb0] sm:$0xff]
        %s1598 = scalar_lea.vmem %s219, 24
        %v1599 = vld [vmem:[%s1598] sm:$0xf]
        %v1601 = vsel %vm262, %v1582, 0
        %v1604 = vsel %vm262, %v1583, 0
        %v1607 = vsel %vm262, %v1584, 0
        %v1610 = vsel %vm262, %v1585, 0
        %v1613 = vsel %vm262, %v1586, 0
        %v1616 = vsel %vm262, %v1587, 0
        %v1619 = vsel %vm262, %v1588, 0
        %v1622 = vsel %vm262, %v1589, 0
        %v1625 = vsel %vm262, %v1590, 0
        %v1628 = vsel %vm262, %v1591, 0
        %v1631 = vsel %vm262, %v1592, 0
        %v1634 = vsel %vm262, %v1593, 0
        %v1637 = vsel %vm262, %v1594, 0
        %v1640 = vsel %vm262, %v1595, 0
        %v1643 = vsel %vm262, %v1596, 0
        %v1646 = vsel %vm262, %v1597, 0
        %v1649 = vsel %vm311, %v1599, 0
        %1651 = vmatprep.subr.mxu0 0.0
        %1652 = vmatpush1.msra.mxu0 0.0
        %1653 = vmatprep.subr.mxu0 0.0
        %1654 = vmatpush1.msra.mxu0 0.0
        %1655 = vmatprep.subr.mxu0 0.0
        %1656 = vmatpush1.msra.mxu0 0.0
        %1657 = vmatprep.subr.mxu0 0.0
        %1658 = vmatpush1.msra.mxu0 0.0
        %1659 = vmatprep.subr.mxu0 0.0
        %1660 = vmatpush1.msra.mxu0 0.0
        %1661 = vmatprep.subr.mxu0 0.0
        %1662 = vmatpush1.msra.mxu0 0.0
        %1663 = vmatprep.subr.mxu0 0.0
        %1664 = vmatpush1.msra.mxu0 0.0
        %1665 = vmatprep.subr.mxu0 0.0
        %1666 = vmatpush1.msra.mxu0 0.0
        %1667 = vmatprep.subr.mxu0 0.0
        %1668 = vmatpush1.msra.mxu0 0.0
        %1669 = vmatprep.subr.mxu0 0.0
        %1670 = vmatpush1.msra.mxu0 0.0
        %1671 = vmatprep.subr.mxu0 0.0
        %1672 = vmatpush1.msra.mxu0 0.0
        %1673 = vmatprep.subr.mxu0 0.0
        %1674 = vmatpush1.msra.mxu0 0.0
        %1675 = vmatprep.subr.mxu0 0.0
        %1676 = vmatpush1.msra.mxu0 0.0
        %1677 = vmatprep.subr.mxu0 0.0
        %1678 = vmatpush1.msra.mxu0 0.0
        %1679 = vmatprep.subr.mxu0 0.0
        %1680 = vmatpush1.msra.mxu0 0.0
        %1681 = vmatprep.subr.mxu0 0.0
        %1682 = vmatpush1.msra.mxu0 %v1649
        %1683 = vmatprep.subr.mxu0 0.0
        %1684 = vmatpush2.msra.mxu0 0.0
        %1685 = vmatprep.subr.mxu0 0.0
        %1686 = vmatpush2.msra.mxu0 0.0
        %1687 = vmatprep.subr.mxu0 0.0
        %1688 = vmatpush2.msra.mxu0 0.0
        %1689 = vmatprep.subr.mxu0 0.0
        %1690 = vmatpush2.msra.mxu0 0.0
        %1691 = vmatprep.subr.mxu0 0.0
        %1692 = vmatpush2.msra.mxu0 0.0
        %1693 = vmatprep.subr.mxu0 0.0
        %1694 = vmatpush2.msra.mxu0 0.0
        %1695 = vmatprep.subr.mxu0 0.0
        %1696 = vmatpush2.msra.mxu0 0.0
        %1697 = vmatprep.subr.mxu0 0.0
        %1698 = vmatpush2.msra.mxu0 0.0
        %1699 = vmatprep.subr.mxu0 0.0
        %1700 = vmatpush2.msra.mxu0 0.0
        %1701 = vmatprep.subr.mxu0 0.0
        %1702 = vmatpush2.msra.mxu0 0.0
        %1703 = vmatprep.subr.mxu0 0.0
        %1704 = vmatpush2.msra.mxu0 0.0
        %1705 = vmatprep.subr.mxu0 0.0
        %1706 = vmatpush2.msra.mxu0 0.0
        %1707 = vmatprep.subr.mxu0 0.0
        %1708 = vmatpush2.msra.mxu0 0.0
        %1709 = vmatprep.subr.mxu0 0.0
        %1710 = vmatpush2.msra.mxu0 0.0
        %1711 = vmatprep.subr.mxu0 0.0
        %1712 = vmatpush2.msra.mxu0 0.0
        %1713 = vmatprep.subr.mxu0 0.0
        %1714 = vmatpush2.msra.mxu0 0.0
        %1715 = vmatprep.mubr.f32.mxu0 0.0
        %1716 = vmatmul.mubr.f32.gmra.mxu0 %v1601
        %v1717 = vpop.f32.mrf.mxu0
        %v1718 = vadd.f32 0.0, %v1717
        %v1719 = vpop.f32.mrf.mxu0
        %1720 = vmatprep.mubr.f32.mxu0 0.0
        %1721 = vmatmul.mubr.f32.gmra.mxu0 %v1604
        %v1722 = vpop.f32.mrf.mxu0
        %v1723 = vadd.f32 0.0, %v1722
        %v1724 = vpop.f32.mrf.mxu0
        %1725 = vmatprep.mubr.f32.mxu0 0.0
        %1726 = vmatmul.mubr.f32.gmra.mxu0 %v1607
        %v1727 = vpop.f32.mrf.mxu0
        %v1728 = vadd.f32 0.0, %v1727
        %v1729 = vpop.f32.mrf.mxu0
        %1730 = vmatprep.mubr.f32.mxu0 0.0
        %1731 = vmatmul.mubr.f32.gmra.mxu0 %v1610
        %v1732 = vpop.f32.mrf.mxu0
        %v1733 = vadd.f32 0.0, %v1732
        %v1734 = vpop.f32.mrf.mxu0
        %1735 = vmatprep.mubr.f32.mxu0 0.0
        %1736 = vmatmul.mubr.f32.gmra.mxu0 %v1613
        %v1737 = vpop.f32.mrf.mxu0
        %v1738 = vadd.f32 0.0, %v1737
        %v1739 = vpop.f32.mrf.mxu0
        %1740 = vmatprep.mubr.f32.mxu0 0.0
        %1741 = vmatmul.mubr.f32.gmra.mxu0 %v1616
        %v1742 = vpop.f32.mrf.mxu0
        %v1743 = vadd.f32 0.0, %v1742
        %v1744 = vpop.f32.mrf.mxu0
        %1745 = vmatprep.mubr.f32.mxu0 0.0
        %1746 = vmatmul.mubr.f32.gmra.mxu0 %v1619
        %v1747 = vpop.f32.mrf.mxu0
        %v1748 = vadd.f32 0.0, %v1747
        %v1749 = vpop.f32.mrf.mxu0
        %1750 = vmatprep.mubr.f32.mxu0 0.0
        %1751 = vmatmul.mubr.f32.gmra.mxu0 %v1622
        %v1752 = vpop.f32.mrf.mxu0
        %v1753 = vadd.f32 0.0, %v1752
        %v1754 = vpop.f32.mrf.mxu0
        %1755 = vmatprep.mubr.f32.mxu0 0.0
        %1756 = vmatmul.mubr.f32.gmra.mxu0 %v1625
        %v1757 = vpop.f32.mrf.mxu0
        %v1758 = vadd.f32 0.0, %v1757
        %v1759 = vpop.f32.mrf.mxu0
        %1760 = vmatprep.mubr.f32.mxu0 0.0
        %1761 = vmatmul.mubr.f32.gmra.mxu0 %v1628
        %v1762 = vpop.f32.mrf.mxu0
        %v1763 = vadd.f32 0.0, %v1762
        %v1764 = vpop.f32.mrf.mxu0
        %1765 = vmatprep.mubr.f32.mxu0 0.0
        %1766 = vmatmul.mubr.f32.gmra.mxu0 %v1631
        %v1767 = vpop.f32.mrf.mxu0
        %v1768 = vadd.f32 0.0, %v1767
        %v1769 = vpop.f32.mrf.mxu0
        %1770 = vmatprep.mubr.f32.mxu0 0.0
        %1771 = vmatmul.mubr.f32.gmra.mxu0 %v1634
        %v1772 = vpop.f32.mrf.mxu0
        %v1773 = vadd.f32 0.0, %v1772
        %v1774 = vpop.f32.mrf.mxu0
        %1775 = vmatprep.mubr.f32.mxu0 0.0
        %1776 = vmatmul.mubr.f32.gmra.mxu0 %v1637
        %v1777 = vpop.f32.mrf.mxu0
        %v1778 = vadd.f32 0.0, %v1777
        %v1779 = vpop.f32.mrf.mxu0
        %1780 = vmatprep.mubr.f32.mxu0 0.0
        %1781 = vmatmul.mubr.f32.gmra.mxu0 %v1640
        %v1782 = vpop.f32.mrf.mxu0
        %v1783 = vadd.f32 0.0, %v1782
        %v1784 = vpop.f32.mrf.mxu0
        %1785 = vmatprep.mubr.f32.mxu0 0.0
        %1786 = vmatmul.mubr.f32.gmra.mxu0 %v1643
        %v1787 = vpop.f32.mrf.mxu0
        %v1788 = vadd.f32 0.0, %v1787
        %v1789 = vpop.f32.mrf.mxu0
        %1790 = vmatprep.mubr.f32.mxu0 0.0
        %1791 = vmatmul.mubr.f32.gmra.mxu0 %v1646
        %v1792 = vpop.f32.mrf.mxu0
        %v1793 = vadd.f32 0.0, %v1792
        %v1794 = vpop.f32.mrf.mxu0
        %1795 = vdwg.mxu0
        %v1796 = vadd.f32 %v1563, %v1718
        %v1797 = vadd.f32 %v1564, %v1723
        %v1798 = vadd.f32 %v1565, %v1728
        %v1799 = vadd.f32 %v1566, %v1733
        %v1800 = vadd.f32 %v1567, %v1738
        %v1801 = vadd.f32 %v1568, %v1743
        %v1802 = vadd.f32 %v1569, %v1748
        %v1803 = vadd.f32 %v1570, %v1753
        %v1804 = vadd.f32 %v1571, %v1758
        %v1805 = vadd.f32 %v1572, %v1763
        %v1806 = vadd.f32 %v1573, %v1768
        %v1807 = vadd.f32 %v1574, %v1773
        %v1808 = vadd.f32 %v1575, %v1778
        %v1809 = vadd.f32 %v1576, %v1783
        %v1810 = vadd.f32 %v1577, %v1788
        %v1811 = vadd.f32 %v1578, %v1793
        %v1812 = vld [vmem:[%s1581 + $0x1] sm:$0xff]
        %v1813 = vld [vmem:[%s1581 + $0x9] sm:$0xff]
        %v1814 = vld [vmem:[%s1581 + $0x19] sm:$0xff]
        %v1815 = vld [vmem:[%s1581 + $0x21] sm:$0xff]
        %v1816 = vld [vmem:[%s1581 + $0x31] sm:$0xff]
        %v1817 = vld [vmem:[%s1581 + $0x39] sm:$0xff]
        %v1818 = vld [vmem:[%s1581 + $0x49] sm:$0xff]
        %v1819 = vld [vmem:[%s1581 + $0x51] sm:$0xff]
        %v1820 = vld [vmem:[%s1581 + $0x61] sm:$0xff]
        %v1821 = vld [vmem:[%s1581 + $0x69] sm:$0xff]
        %v1822 = vld [vmem:[%s1581 + $0x79] sm:$0xff]
        %v1823 = vld [vmem:[%s1581 + $0x81] sm:$0xff]
        %v1824 = vld [vmem:[%s1581 + $0x91] sm:$0xff]
        %v1825 = vld [vmem:[%s1581 + $0x99] sm:$0xff]
        %v1826 = vld [vmem:[%s1581 + $0xa9] sm:$0xff]
        %v1827 = vld [vmem:[%s1581 + $0xb1] sm:$0xff]
        %s1828 = scalar_lea.vmem %s219, 28
        %v1829 = vld [vmem:[%s1828] sm:$0xf]
        %v1831 = vsel %vm262, %v1812, 0
        %v1834 = vsel %vm262, %v1813, 0
        %v1837 = vsel %vm262, %v1814, 0
        %v1840 = vsel %vm262, %v1815, 0
        %v1843 = vsel %vm262, %v1816, 0
        %v1846 = vsel %vm262, %v1817, 0
        %v1849 = vsel %vm262, %v1818, 0
        %v1852 = vsel %vm262, %v1819, 0
        %v1855 = vsel %vm262, %v1820, 0
        %v1858 = vsel %vm262, %v1821, 0
        %v1861 = vsel %vm262, %v1822, 0
        %v1864 = vsel %vm262, %v1823, 0
        %v1867 = vsel %vm262, %v1824, 0
        %v1870 = vsel %vm262, %v1825, 0
        %v1873 = vsel %vm262, %v1826, 0
        %v1876 = vsel %vm262, %v1827, 0
        %v1879 = vsel %vm311, %v1829, 0
        %1881 = vmatprep.subr.mxu0 0.0
        %1882 = vmatpush1.msra.mxu0 0.0
        %1883 = vmatprep.subr.mxu0 0.0
        %1884 = vmatpush1.msra.mxu0 0.0
        %1885 = vmatprep.subr.mxu0 0.0
        %1886 = vmatpush1.msra.mxu0 0.0
        %1887 = vmatprep.subr.mxu0 0.0
        %1888 = vmatpush1.msra.mxu0 0.0
        %1889 = vmatprep.subr.mxu0 0.0
        %1890 = vmatpush1.msra.mxu0 0.0
        %1891 = vmatprep.subr.mxu0 0.0
        %1892 = vmatpush1.msra.mxu0 0.0
        %1893 = vmatprep.subr.mxu0 0.0
        %1894 = vmatpush1.msra.mxu0 0.0
        %1895 = vmatprep.subr.mxu0 0.0
        %1896 = vmatpush1.msra.mxu0 0.0
        %1897 = vmatprep.subr.mxu0 0.0
        %1898 = vmatpush1.msra.mxu0 0.0
        %1899 = vmatprep.subr.mxu0 0.0
        %1900 = vmatpush1.msra.mxu0 0.0
        %1901 = vmatprep.subr.mxu0 0.0
        %1902 = vmatpush1.msra.mxu0 0.0
        %1903 = vmatprep.subr.mxu0 0.0
        %1904 = vmatpush1.msra.mxu0 0.0
        %1905 = vmatprep.subr.mxu0 0.0
        %1906 = vmatpush1.msra.mxu0 0.0
        %1907 = vmatprep.subr.mxu0 0.0
        %1908 = vmatpush1.msra.mxu0 0.0
        %1909 = vmatprep.subr.mxu0 0.0
        %1910 = vmatpush1.msra.mxu0 0.0
        %1911 = vmatprep.subr.mxu0 0.0
        %1912 = vmatpush1.msra.mxu0 %v1879
        %1913 = vmatprep.subr.mxu0 0.0
        %1914 = vmatpush2.msra.mxu0 0.0
        %1915 = vmatprep.subr.mxu0 0.0
        %1916 = vmatpush2.msra.mxu0 0.0
        %1917 = vmatprep.subr.mxu0 0.0
        %1918 = vmatpush2.msra.mxu0 0.0
        %1919 = vmatprep.subr.mxu0 0.0
        %1920 = vmatpush2.msra.mxu0 0.0
        %1921 = vmatprep.subr.mxu0 0.0
        %1922 = vmatpush2.msra.mxu0 0.0
        %1923 = vmatprep.subr.mxu0 0.0
        %1924 = vmatpush2.msra.mxu0 0.0
        %1925 = vmatprep.subr.mxu0 0.0
        %1926 = vmatpush2.msra.mxu0 0.0
        %1927 = vmatprep.subr.mxu0 0.0
        %1928 = vmatpush2.msra.mxu0 0.0
        %1929 = vmatprep.subr.mxu0 0.0
        %1930 = vmatpush2.msra.mxu0 0.0
        %1931 = vmatprep.subr.mxu0 0.0
        %1932 = vmatpush2.msra.mxu0 0.0
        %1933 = vmatprep.subr.mxu0 0.0
        %1934 = vmatpush2.msra.mxu0 0.0
        %1935 = vmatprep.subr.mxu0 0.0
        %1936 = vmatpush2.msra.mxu0 0.0
        %1937 = vmatprep.subr.mxu0 0.0
        %1938 = vmatpush2.msra.mxu0 0.0
        %1939 = vmatprep.subr.mxu0 0.0
        %1940 = vmatpush2.msra.mxu0 0.0
        %1941 = vmatprep.subr.mxu0 0.0
        %1942 = vmatpush2.msra.mxu0 0.0
        %1943 = vmatprep.subr.mxu0 0.0
        %1944 = vmatpush2.msra.mxu0 0.0
        %1945 = vmatprep.mubr.f32.mxu0 0.0
        %1946 = vmatmul.mubr.f32.gmra.mxu0 %v1831
        %v1947 = vpop.f32.mrf.mxu0
        %v1948 = vadd.f32 0.0, %v1947
        %v1949 = vpop.f32.mrf.mxu0
        %1950 = vmatprep.mubr.f32.mxu0 0.0
        %1951 = vmatmul.mubr.f32.gmra.mxu0 %v1834
        %v1952 = vpop.f32.mrf.mxu0
        %v1953 = vadd.f32 0.0, %v1952
        %v1954 = vpop.f32.mrf.mxu0
        %1955 = vmatprep.mubr.f32.mxu0 0.0
        %1956 = vmatmul.mubr.f32.gmra.mxu0 %v1837
        %v1957 = vpop.f32.mrf.mxu0
        %v1958 = vadd.f32 0.0, %v1957
        %v1959 = vpop.f32.mrf.mxu0
        %1960 = vmatprep.mubr.f32.mxu0 0.0
        %1961 = vmatmul.mubr.f32.gmra.mxu0 %v1840
        %v1962 = vpop.f32.mrf.mxu0
        %v1963 = vadd.f32 0.0, %v1962
        %v1964 = vpop.f32.mrf.mxu0
        %1965 = vmatprep.mubr.f32.mxu0 0.0
        %1966 = vmatmul.mubr.f32.gmra.mxu0 %v1843
        %v1967 = vpop.f32.mrf.mxu0
        %v1968 = vadd.f32 0.0, %v1967
        %v1969 = vpop.f32.mrf.mxu0
        %1970 = vmatprep.mubr.f32.mxu0 0.0
        %1971 = vmatmul.mubr.f32.gmra.mxu0 %v1846
        %v1972 = vpop.f32.mrf.mxu0
        %v1973 = vadd.f32 0.0, %v1972
        %v1974 = vpop.f32.mrf.mxu0
        %1975 = vmatprep.mubr.f32.mxu0 0.0
        %1976 = vmatmul.mubr.f32.gmra.mxu0 %v1849
        %v1977 = vpop.f32.mrf.mxu0
        %v1978 = vadd.f32 0.0, %v1977
        %v1979 = vpop.f32.mrf.mxu0
        %1980 = vmatprep.mubr.f32.mxu0 0.0
        %1981 = vmatmul.mubr.f32.gmra.mxu0 %v1852
        %v1982 = vpop.f32.mrf.mxu0
        %v1983 = vadd.f32 0.0, %v1982
        %v1984 = vpop.f32.mrf.mxu0
        %1985 = vmatprep.mubr.f32.mxu0 0.0
        %1986 = vmatmul.mubr.f32.gmra.mxu0 %v1855
        %v1987 = vpop.f32.mrf.mxu0
        %v1988 = vadd.f32 0.0, %v1987
        %v1989 = vpop.f32.mrf.mxu0
        %1990 = vmatprep.mubr.f32.mxu0 0.0
        %1991 = vmatmul.mubr.f32.gmra.mxu0 %v1858
        %v1992 = vpop.f32.mrf.mxu0
        %v1993 = vadd.f32 0.0, %v1992
        %v1994 = vpop.f32.mrf.mxu0
        %1995 = vmatprep.mubr.f32.mxu0 0.0
        %1996 = vmatmul.mubr.f32.gmra.mxu0 %v1861
        %v1997 = vpop.f32.mrf.mxu0
        %v1998 = vadd.f32 0.0, %v1997
        %v1999 = vpop.f32.mrf.mxu0
        %2000 = vmatprep.mubr.f32.mxu0 0.0
        %2001 = vmatmul.mubr.f32.gmra.mxu0 %v1864
        %v2002 = vpop.f32.mrf.mxu0
        %v2003 = vadd.f32 0.0, %v2002
        %v2004 = vpop.f32.mrf.mxu0
        %2005 = vmatprep.mubr.f32.mxu0 0.0
        %2006 = vmatmul.mubr.f32.gmra.mxu0 %v1867
        %v2007 = vpop.f32.mrf.mxu0
        %v2008 = vadd.f32 0.0, %v2007
        %v2009 = vpop.f32.mrf.mxu0
        %2010 = vmatprep.mubr.f32.mxu0 0.0
        %2011 = vmatmul.mubr.f32.gmra.mxu0 %v1870
        %v2012 = vpop.f32.mrf.mxu0
        %v2013 = vadd.f32 0.0, %v2012
        %v2014 = vpop.f32.mrf.mxu0
        %2015 = vmatprep.mubr.f32.mxu0 0.0
        %2016 = vmatmul.mubr.f32.gmra.mxu0 %v1873
        %v2017 = vpop.f32.mrf.mxu0
        %v2018 = vadd.f32 0.0, %v2017
        %v2019 = vpop.f32.mrf.mxu0
        %2020 = vmatprep.mubr.f32.mxu0 0.0
        %2021 = vmatmul.mubr.f32.gmra.mxu0 %v1876
        %v2022 = vpop.f32.mrf.mxu0
        %v2023 = vadd.f32 0.0, %v2022
        %v2024 = vpop.f32.mrf.mxu0
        %2025 = vdwg.mxu0
        %v2026 = vadd.f32 %v1796, %v1948
        %v2027 = vadd.f32 %v1797, %v1953
        %v2028 = vadd.f32 %v1798, %v1958
        %v2029 = vadd.f32 %v1799, %v1963
        %v2030 = vadd.f32 %v1800, %v1968
        %v2031 = vadd.f32 %v1801, %v1973
        %v2032 = vadd.f32 %v1802, %v1978
        %v2033 = vadd.f32 %v1803, %v1983
        %v2034 = vadd.f32 %v1804, %v1988
        %v2035 = vadd.f32 %v1805, %v1993
        %v2036 = vadd.f32 %v1806, %v1998
        %v2037 = vadd.f32 %v1807, %v2003
        %v2038 = vadd.f32 %v1808, %v2008
        %v2039 = vadd.f32 %v1809, %v2013
        %v2040 = vadd.f32 %v1810, %v2018
        %v2041 = vadd.f32 %v1811, %v2023
        %v2042 = vld [vmem:[%s1581 + $0x2] sm:$0xff]
        %v2043 = vld [vmem:[%s1581 + $0xa] sm:$0xff]
        %v2044 = vld [vmem:[%s1581 + $0x1a] sm:$0xff]
        %v2045 = vld [vmem:[%s1581 + $0x22] sm:$0xff]
        %v2046 = vld [vmem:[%s1581 + $0x32] sm:$0xff]
        %v2047 = vld [vmem:[%s1581 + $0x3a] sm:$0xff]
        %v2048 = vld [vmem:[%s1581 + $0x4a] sm:$0xff]
        %v2049 = vld [vmem:[%s1581 + $0x52] sm:$0xff]
        %v2050 = vld [vmem:[%s1581 + $0x62] sm:$0xff]
        %v2051 = vld [vmem:[%s1581 + $0x6a] sm:$0xff]
        %v2052 = vld [vmem:[%s1581 + $0x7a] sm:$0xff]
        %v2053 = vld [vmem:[%s1581 + $0x82] sm:$0xff]
        %v2054 = vld [vmem:[%s1581 + $0x92] sm:$0xff]
        %v2055 = vld [vmem:[%s1581 + $0x9a] sm:$0xff]
        %v2056 = vld [vmem:[%s1581 + $0xaa] sm:$0xff]
        %v2057 = vld [vmem:[%s1581 + $0xb2] sm:$0xff]
        %s2058 = scalar_lea.vmem %s219, 32
        %v2059 = vld [vmem:[%s2058] sm:$0xf]
        %v2061 = vsel %vm262, %v2042, 0
        %v2064 = vsel %vm262, %v2043, 0
        %v2067 = vsel %vm262, %v2044, 0
        %v2070 = vsel %vm262, %v2045, 0
        %v2073 = vsel %vm262, %v2046, 0
        %v2076 = vsel %vm262, %v2047, 0
        %v2079 = vsel %vm262, %v2048, 0
        %v2082 = vsel %vm262, %v2049, 0
        %v2085 = vsel %vm262, %v2050, 0
        %v2088 = vsel %vm262, %v2051, 0
        %v2091 = vsel %vm262, %v2052, 0
        %v2094 = vsel %vm262, %v2053, 0
        %v2097 = vsel %vm262, %v2054, 0
        %v2100 = vsel %vm262, %v2055, 0
        %v2103 = vsel %vm262, %v2056, 0
        %v2106 = vsel %vm262, %v2057, 0
        %v2109 = vsel %vm311, %v2059, 0
        %2111 = vmatprep.subr.mxu0 0.0
        %2112 = vmatpush1.msra.mxu0 0.0
        %2113 = vmatprep.subr.mxu0 0.0
        %2114 = vmatpush1.msra.mxu0 0.0
        %2115 = vmatprep.subr.mxu0 0.0
        %2116 = vmatpush1.msra.mxu0 0.0
        %2117 = vmatprep.subr.mxu0 0.0
        %2118 = vmatpush1.msra.mxu0 0.0
        %2119 = vmatprep.subr.mxu0 0.0
        %2120 = vmatpush1.msra.mxu0 0.0
        %2121 = vmatprep.subr.mxu0 0.0
        %2122 = vmatpush1.msra.mxu0 0.0
        %2123 = vmatprep.subr.mxu0 0.0
        %2124 = vmatpush1.msra.mxu0 0.0
        %2125 = vmatprep.subr.mxu0 0.0
        %2126 = vmatpush1.msra.mxu0 0.0
        %2127 = vmatprep.subr.mxu0 0.0
        %2128 = vmatpush1.msra.mxu0 0.0
        %2129 = vmatprep.subr.mxu0 0.0
        %2130 = vmatpush1.msra.mxu0 0.0
        %2131 = vmatprep.subr.mxu0 0.0
        %2132 = vmatpush1.msra.mxu0 0.0
        %2133 = vmatprep.subr.mxu0 0.0
        %2134 = vmatpush1.msra.mxu0 0.0
        %2135 = vmatprep.subr.mxu0 0.0
        %2136 = vmatpush1.msra.mxu0 0.0
        %2137 = vmatprep.subr.mxu0 0.0
        %2138 = vmatpush1.msra.mxu0 0.0
        %2139 = vmatprep.subr.mxu0 0.0
        %2140 = vmatpush1.msra.mxu0 0.0
        %2141 = vmatprep.subr.mxu0 0.0
        %2142 = vmatpush1.msra.mxu0 %v2109
        %2143 = vmatprep.subr.mxu0 0.0
        %2144 = vmatpush2.msra.mxu0 0.0
        %2145 = vmatprep.subr.mxu0 0.0
        %2146 = vmatpush2.msra.mxu0 0.0
        %2147 = vmatprep.subr.mxu0 0.0
        %2148 = vmatpush2.msra.mxu0 0.0
        %2149 = vmatprep.subr.mxu0 0.0
        %2150 = vmatpush2.msra.mxu0 0.0
        %2151 = vmatprep.subr.mxu0 0.0
        %2152 = vmatpush2.msra.mxu0 0.0
        %2153 = vmatprep.subr.mxu0 0.0
        %2154 = vmatpush2.msra.mxu0 0.0
        %2155 = vmatprep.subr.mxu0 0.0
        %2156 = vmatpush2.msra.mxu0 0.0
        %2157 = vmatprep.subr.mxu0 0.0
        %2158 = vmatpush2.msra.mxu0 0.0
        %2159 = vmatprep.subr.mxu0 0.0
        %2160 = vmatpush2.msra.mxu0 0.0
        %2161 = vmatprep.subr.mxu0 0.0
        %2162 = vmatpush2.msra.mxu0 0.0
        %2163 = vmatprep.subr.mxu0 0.0
        %2164 = vmatpush2.msra.mxu0 0.0
        %2165 = vmatprep.subr.mxu0 0.0
        %2166 = vmatpush2.msra.mxu0 0.0
        %2167 = vmatprep.subr.mxu0 0.0
        %2168 = vmatpush2.msra.mxu0 0.0
        %2169 = vmatprep.subr.mxu0 0.0
        %2170 = vmatpush2.msra.mxu0 0.0
        %2171 = vmatprep.subr.mxu0 0.0
        %2172 = vmatpush2.msra.mxu0 0.0
        %2173 = vmatprep.subr.mxu0 0.0
        %2174 = vmatpush2.msra.mxu0 0.0
        %2175 = vmatprep.mubr.f32.mxu0 0.0
        %2176 = vmatmul.mubr.f32.gmra.mxu0 %v2061
        %v2177 = vpop.f32.mrf.mxu0
        %v2178 = vadd.f32 0.0, %v2177
        %v2179 = vpop.f32.mrf.mxu0
        %2180 = vmatprep.mubr.f32.mxu0 0.0
        %2181 = vmatmul.mubr.f32.gmra.mxu0 %v2064
        %v2182 = vpop.f32.mrf.mxu0
        %v2183 = vadd.f32 0.0, %v2182
        %v2184 = vpop.f32.mrf.mxu0
        %2185 = vmatprep.mubr.f32.mxu0 0.0
        %2186 = vmatmul.mubr.f32.gmra.mxu0 %v2067
        %v2187 = vpop.f32.mrf.mxu0
        %v2188 = vadd.f32 0.0, %v2187
        %v2189 = vpop.f32.mrf.mxu0
        %2190 = vmatprep.mubr.f32.mxu0 0.0
        %2191 = vmatmul.mubr.f32.gmra.mxu0 %v2070
        %v2192 = vpop.f32.mrf.mxu0
        %v2193 = vadd.f32 0.0, %v2192
        %v2194 = vpop.f32.mrf.mxu0
        %2195 = vmatprep.mubr.f32.mxu0 0.0
        %2196 = vmatmul.mubr.f32.gmra.mxu0 %v2073
        %v2197 = vpop.f32.mrf.mxu0
        %v2198 = vadd.f32 0.0, %v2197
        %v2199 = vpop.f32.mrf.mxu0
        %2200 = vmatprep.mubr.f32.mxu0 0.0
        %2201 = vmatmul.mubr.f32.gmra.mxu0 %v2076
        %v2202 = vpop.f32.mrf.mxu0
        %v2203 = vadd.f32 0.0, %v2202
        %v2204 = vpop.f32.mrf.mxu0
        %2205 = vmatprep.mubr.f32.mxu0 0.0
        %2206 = vmatmul.mubr.f32.gmra.mxu0 %v2079
        %v2207 = vpop.f32.mrf.mxu0
        %v2208 = vadd.f32 0.0, %v2207
        %v2209 = vpop.f32.mrf.mxu0
        %2210 = vmatprep.mubr.f32.mxu0 0.0
        %2211 = vmatmul.mubr.f32.gmra.mxu0 %v2082
        %v2212 = vpop.f32.mrf.mxu0
        %v2213 = vadd.f32 0.0, %v2212
        %v2214 = vpop.f32.mrf.mxu0
        %2215 = vmatprep.mubr.f32.mxu0 0.0
        %2216 = vmatmul.mubr.f32.gmra.mxu0 %v2085
        %v2217 = vpop.f32.mrf.mxu0
        %v2218 = vadd.f32 0.0, %v2217
        %v2219 = vpop.f32.mrf.mxu0
        %2220 = vmatprep.mubr.f32.mxu0 0.0
        %2221 = vmatmul.mubr.f32.gmra.mxu0 %v2088
        %v2222 = vpop.f32.mrf.mxu0
        %v2223 = vadd.f32 0.0, %v2222
        %v2224 = vpop.f32.mrf.mxu0
        %2225 = vmatprep.mubr.f32.mxu0 0.0
        %2226 = vmatmul.mubr.f32.gmra.mxu0 %v2091
        %v2227 = vpop.f32.mrf.mxu0
        %v2228 = vadd.f32 0.0, %v2227
        %v2229 = vpop.f32.mrf.mxu0
        %2230 = vmatprep.mubr.f32.mxu0 0.0
        %2231 = vmatmul.mubr.f32.gmra.mxu0 %v2094
        %v2232 = vpop.f32.mrf.mxu0
        %v2233 = vadd.f32 0.0, %v2232
        %v2234 = vpop.f32.mrf.mxu0
        %2235 = vmatprep.mubr.f32.mxu0 0.0
        %2236 = vmatmul.mubr.f32.gmra.mxu0 %v2097
        %v2237 = vpop.f32.mrf.mxu0
        %v2238 = vadd.f32 0.0, %v2237
        %v2239 = vpop.f32.mrf.mxu0
        %2240 = vmatprep.mubr.f32.mxu0 0.0
        %2241 = vmatmul.mubr.f32.gmra.mxu0 %v2100
        %v2242 = vpop.f32.mrf.mxu0
        %v2243 = vadd.f32 0.0, %v2242
        %v2244 = vpop.f32.mrf.mxu0
        %2245 = vmatprep.mubr.f32.mxu0 0.0
        %2246 = vmatmul.mubr.f32.gmra.mxu0 %v2103
        %v2247 = vpop.f32.mrf.mxu0
        %v2248 = vadd.f32 0.0, %v2247
        %v2249 = vpop.f32.mrf.mxu0
        %2250 = vmatprep.mubr.f32.mxu0 0.0
        %2251 = vmatmul.mubr.f32.gmra.mxu0 %v2106
        %v2252 = vpop.f32.mrf.mxu0
        %v2253 = vadd.f32 0.0, %v2252
        %v2254 = vpop.f32.mrf.mxu0
        %2255 = vdwg.mxu0
        %v2256 = vadd.f32 %v2026, %v2178
        %v2257 = vadd.f32 %v2027, %v2183
        %v2258 = vadd.f32 %v2028, %v2188
        %v2259 = vadd.f32 %v2029, %v2193
        %v2260 = vadd.f32 %v2030, %v2198
        %v2261 = vadd.f32 %v2031, %v2203
        %v2262 = vadd.f32 %v2032, %v2208
        %v2263 = vadd.f32 %v2033, %v2213
        %v2264 = vadd.f32 %v2034, %v2218
        %v2265 = vadd.f32 %v2035, %v2223
        %v2266 = vadd.f32 %v2036, %v2228
        %v2267 = vadd.f32 %v2037, %v2233
        %v2268 = vadd.f32 %v2038, %v2238
        %v2269 = vadd.f32 %v2039, %v2243
        %v2270 = vadd.f32 %v2040, %v2248
        %v2271 = vadd.f32 %v2041, %v2253
        %v2272 = vld [vmem:[%s222] sm:$0x1]
        %v2274 = vlaneseq
        %v2275 = vshrl.u32 %v2274, 7
        %v2276 = vsub.s32 0, %v2275
        %v2277 = vrot.slane %v2272, %v2276
        %v2279 = vadd.f32 %v2256, %v2277
        %v2280 = vadd.f32 %v2257, %v2277
        %v2281 = vadd.f32 %v2258, %v2277
        %v2282 = vadd.f32 %v2259, %v2277
        %v2283 = vadd.f32 %v2260, %v2277
        %v2284 = vadd.f32 %v2261, %v2277
        %v2285 = vadd.f32 %v2262, %v2277
        %v2286 = vadd.f32 %v2263, %v2277
        %v2287 = vadd.f32 %v2264, %v2277
        %v2288 = vadd.f32 %v2265, %v2277
        %v2289 = vadd.f32 %v2266, %v2277
        %v2290 = vadd.f32 %v2267, %v2277
        %v2291 = vadd.f32 %v2268, %v2277
        %v2292 = vadd.f32 %v2269, %v2277
        %v2293 = vadd.f32 %v2270, %v2277
        %v2294 = vadd.f32 %v2271, %v2277
        %2295 = vst [vmem:[%s210] sm:$0xff] %v2279
        %2296 = vst [vmem:[%s210 + $0x8] sm:$0xff] %v2280
        %2297 = vst [vmem:[%s210 + $0x10] sm:$0xff] %v2281
        %2298 = vst [vmem:[%s210 + $0x18] sm:$0xff] %v2282
        %2299 = vst [vmem:[%s210 + $0x20] sm:$0xff] %v2283
        %2300 = vst [vmem:[%s210 + $0x28] sm:$0xff] %v2284
        %2301 = vst [vmem:[%s210 + $0x30] sm:$0xff] %v2285
        %2302 = vst [vmem:[%s210 + $0x38] sm:$0xff] %v2286
        %2303 = vst [vmem:[%s210 + $0x40] sm:$0xff] %v2287
        %2304 = vst [vmem:[%s210 + $0x48] sm:$0xff] %v2288
        %2305 = vst [vmem:[%s210 + $0x50] sm:$0xff] %v2289
        %2306 = vst [vmem:[%s210 + $0x58] sm:$0xff] %v2290
        %2307 = vst [vmem:[%s210 + $0x60] sm:$0xff] %v2291
        %2308 = vst [vmem:[%s210 + $0x68] sm:$0xff] %v2292
        %2309 = vst [vmem:[%s210 + $0x70] sm:$0xff] %v2293
        %2310 = vst [vmem:[%s210 + $0x78] sm:$0xff] %v2294
        %s2311 = sand.u32 %s126, 1
        %s2312 = scalar_lea.sflag [#allocation3], %s2311
        %s2313 = sand.u32 %s126, 1
        %s2314 = smul.addr %s2313, 128
        %s2315 = scalar_lea.vmem [#allocation2], %s2314
        // Predicated region
        $region33: #{tpu_custom_call.1} parent=31 // pred_check
          %p2316 = pneg %p136
        $region34: #{tpu_custom_call.1} parent=31 // pred_check_branch
          %2318 = sbr.rel (%p2316) target = $region36
        $region35: #{tpu_custom_call.1} parent=31 // pred_region
          %s2319 = smul.u32 8, %s23
          %s2321 = ssub.s32 2048, 2048
          %2322 = vsyncadd %s2312, %s2321
          %s2323 = smul.addr %s2319, 2
          %s2324 = sadd.s32 %s24, %s2323
          %s2325 = smul.addr %s22, 32
          %s2326 = sadd.s32 %s2324, %s2325
          %s2327 = smul.addr %s2326, 128
          %s2328 = scalar_lea.hbm %s3, %s2327
          %s2329 = sshll.u32 %s2315, 4
          %s2330 = int_to_ptr.vmem [resolvable:$true] %s2329
          %2335 = dma.vmem_to_hbm [thread:$0]  %s2330, 2048, %s2328, %s2312, 128, 128, 8
        $region36: #{tpu_custom_call.1} parent=31 // pred_fallthru
          _
      $region32: #{tpu_custom_call.1} parent=5 // pred_fallthru
        _
      %p2336 = scmp.le.s32.totalorder 2, %s12
      // Predicated region
      $region37: #{tpu_custom_call.1} parent=5 // pred_check
        %p2337 = pneg %p2336
      $region38: #{tpu_custom_call.1} parent=5 // pred_check_branch
        %2339 = sbr.rel (%p2337) target = $region40
      $region39: #{tpu_custom_call.1} parent=5 // pred_region
        %s2340 = ssub.s32 %s12, 2
        // Predicated region
        $region41: #{tpu_custom_call.1} parent=39 // pred_check
          %p2341 = pneg %p142
        $region42: #{tpu_custom_call.1} parent=39 // pred_check_branch
          %2343 = sbr.rel (%p2341) target = $region44
        $region43: #{tpu_custom_call.1} parent=39 // pred_region
          %s2344 = sand.u32 %s127, 1
          %s2345 = scalar_lea.sflag [#allocation3], %s2344
          %s2346 = sand.u32 %s127, 1
          %s2347 = smul.addr %s2346, 128
          %s2348 = scalar_lea.vmem [#allocation2], %s2347
          %2349 = dma.done %s2345, 2048
        $region44: #{tpu_custom_call.1} parent=39 // pred_fallthru
          _
      $region40: #{tpu_custom_call.1} parent=5 // pred_fallthru
        _
    $region6: #{tpu_custom_call.1} parent=1 // loop_footer
      %s16 = sadd.s32 1, %s12
    $region7: #{tpu_custom_call.1} parent=1 // loop_footer_branch
      %11 = sbr.rel target = $region3
    $region8: #{tpu_custom_call.1} parent=1 // loop_exit
      _
    %2350 = vsyncpa [#allocation3], 1
    %s2351 = scalar_lea.sflag [#allocation3], 1
    %2352 = vsyncpa %s2351, 1

</llo_original>
